<compile_context>
chip_gen: v6e
topology: v6e:2x2x1
jax: 0.10.0
libtpu: 0.0.40
codegen_flags: <defaults>
</compile_context>

<pallas_src>
import functools

import jax
import jax.numpy as jnp
import numpy as np
from jax.experimental import pallas as pl
from jax.experimental.pallas import tpu as pltpu


CP = 128        # lane width / MXU tile dim
C = 8           # channel slots per image column in the interleaved layout
IMAGENET_MEAN = np.array([0.485, 0.456, 0.406], np.float32)
IMAGENET_STD = np.array([0.229, 0.224, 0.225], np.float32)


# ------------------------------------------------------------------- kernel --

def fused_warp_resnet_kernel(x_ref, mean_ref, inv_ref,
                             ms_ref, bs_ref, m1_ref, b1_ref, m2_ref, b2_ref,
                             fcw_ref, fcb_ref, out_ref, *, H, W, B):
    zero_row = jnp.zeros((1, CP), jnp.float32)

    def shifted(act, di):
        # Row-tap shift of the stacked (B*H, 128) activation; per-image zero
        # halo rows give the top/bottom conv padding.  Column padding is folded
        # into the banded weights, so no lane masking is needed.  The shifts
        # lower to cheap sublane moves (XLU slot, idle otherwise).
        if di == 1:
            return act
        rows = []
        for b in range(B):
            img = act[b * H:(b + 1) * H]
            if di == 0:
                rows.append(jnp.concatenate([zero_row, img[:-1]], axis=0))
            else:
                rows.append(jnp.concatenate([img[1:], zero_row], axis=0))
        return rows[0] if B == 1 else jnp.concatenate(rows, axis=0)

    def conv3x3(act, m_ref, b_ref):
        # One (B*H,128)@(128,128) matmul per row tap; the K dim packs
        # 16 columns x 8 channels, and the 3 column taps live in the band
        # structure of m_ref.  Value-carried accumulator (no VMEM RMW).
        acc = jnp.dot(shifted(act, 0), m_ref[0], preferred_element_type=jnp.float32)
        acc = acc + jnp.dot(act, m_ref[1], preferred_element_type=jnp.float32)
        acc = acc + jnp.dot(shifted(act, 2), m_ref[2], preferred_element_type=jnp.float32)
        return acc + b_ref[...]

    # ---- normalize prologue: (x - mean) * (1/std); exact reference semantics
    # (conv zero-padding stays exactly zero). --------------------------------
    xn = (x_ref[...] - mean_ref[...]) * inv_ref[...]           # (B, H, 128)
    act = xn.reshape(B * H, CP)

    # ---- stem conv + relu --------------------------------------------------
    stem = jnp.maximum(conv3x3(act, ms_ref, bs_ref), 0.0)      # (B*H, 128)

    # ---- residual block: conv1+relu, conv2, fused residual-add + relu ------
    y = jnp.maximum(conv3x3(stem, m1_ref, b1_ref), 0.0)
    y = conv3x3(y, m2_ref, b2_ref)
    h = jnp.maximum(y + stem, 0.0)

    # ---- fused GAP + FC: row-sum per image; the sum over image columns is
    # folded into the row-tiled fc weight. -----------------------------------
    pooled = jnp.concatenate(
        [jnp.sum(h[b * H:(b + 1) * H], axis=0, keepdims=True) for b in range(B)],
        axis=0)                                                # (B, 128)
    logits = jnp.dot(pooled * (1.0 / (H * W)), fcw_ref[...],
                     preferred_element_type=jnp.float32) + fcb_ref[...]
    out_ref[...] = logits.reshape(B, 1, CP)


# -------------------------------------------------------- host-side weights --

def _banded_conv_weights(w, cin, cout, W):
    # (9*cin, cout) im2col weights (tap-major, channel-minor — reference
    # ordering) -> 3 banded (128,128) matrices, one per row tap.  The three
    # column taps and the zero-pad column boundary live in the band structure.
    w9 = np.asarray(w, np.float32).reshape(3, 3, cin, cout)
    m = np.zeros((3, W * C, W * C), np.float32)
    for di in range(3):
        for j in range(W):
            for dj in range(3):
                jp = j + dj - 1
                if 0 <= jp < W:
                    m[di, jp * C:jp * C + cin, j * C:j * C + cout] = w9[di, dj]
    return jnp.asarray(m)


def _row_vec(vals, W):
    # per-channel values -> interleaved (1, W*C) lane vector (pad slots = 0)
    vals = np.asarray(vals, np.float32)
    v = np.zeros((W, C), np.float32)
    v[:, :vals.shape[0]] = vals
    return jnp.asarray(v.reshape(1, W * C))


def _fc_weights(fc_w, fc_b, c_hidden, num_classes, W):
    blk = np.zeros((C, CP), np.float32)
    blk[:c_hidden, :num_classes] = np.asarray(fc_w, np.float32)
    fcw = np.tile(blk, (W, 1))                                  # (W*C, 128)
    fcb = np.zeros((1, CP), np.float32)
    fcb[0, :num_classes] = np.asarray(fc_b, np.float32)
    return jnp.asarray(fcw), jnp.asarray(fcb)


def _pick_img_block(n):
    # batch images per grid step (overhead amortization) while keeping
    # grid >= 2 so both v7x TensorCores get work.
    for b in (8, 4, 2):
        if n % b == 0 and n // b >= 2:
            return b
    return 1


# ------------------------------------------------------------------ wrapper --

def warp_resnet_forward(x_nchw, params, num_classes=10, img_block=None):
    N, Cin, H, W = x_nchw.shape
    c_hidden = params["stem_b"].shape[0]
    assert Cin == 3, "ImageNet mean/std in the module imply 3 input channels"
    assert W * C == CP, "kernel assumes W * 8 channel slots == 128 lanes"
    assert H % 8 == 0 and c_hidden <= C and num_classes <= CP

    B = _pick_img_block(N) if img_block is None else img_block
    assert N % B == 0

    # layout plumbing (pure JAX, once): NCHW -> channel-interleaved (N, H, W*8)
    x = jnp.transpose(x_nchw, (0, 2, 3, 1))
    x = jnp.pad(x, ((0, 0), (0, 0), (0, 0), (0, C - Cin)))
    x = x.reshape(N, H, W * C)

    mean_v = _row_vec(IMAGENET_MEAN, W)
    inv_v = _row_vec(1.0 / IMAGENET_STD, W)        # precomputed reciprocal

    ms = _banded_conv_weights(params["stem_w"], Cin, c_hidden, W)
    m1 = _banded_conv_weights(params["b1_w1"], c_hidden, c_hidden, W)
    m2 = _banded_conv_weights(params["b1_w2"], c_hidden, c_hidden, W)
    bs = _row_vec(params["stem_b"], W)
    b1 = _row_vec(params["b1_b1"], W)
    b2 = _row_vec(params["b1_b2"], W)
    fcw, fcb = _fc_weights(params["fc_w"], params["fc_b"], c_hidden,
                           num_classes, W)

    kernel = functools.partial(fused_warp_resnet_kernel, H=H, W=W, B=B)
    const2 = lambda n: (0, 0)
    const3 = lambda n: (0, 0, 0)

    out = pl.pallas_call(
        kernel,
        grid=(N // B,),
        in_specs=[
            pl.BlockSpec((B, H, CP), lambda n: (n, 0, 0)),     # images
            pl.BlockSpec((1, CP), const2),                     # mean (interleaved)
            pl.BlockSpec((1, CP), const2),                     # 1/std
            pl.BlockSpec((3, CP, CP), const3),                 # stem banded w
            pl.BlockSpec((1, CP), const2),                     # stem bias
            pl.BlockSpec((3, CP, CP), const3),                 # block conv1 w
            pl.BlockSpec((1, CP), const2),                     # block conv1 bias
            pl.BlockSpec((3, CP, CP), const3),                 # block conv2 w
            pl.BlockSpec((1, CP), const2),                     # block conv2 bias
            pl.BlockSpec((CP, CP), const2),                    # GAP-fused fc w
            pl.BlockSpec((1, CP), const2),                     # fc bias
        ],
        out_specs=pl.BlockSpec((B, 1, CP), lambda n: (n, 0, 0)),
        out_shape=jax.ShapeDtypeStruct((N, 1, CP), jnp.float32),
        compiler_params=pltpu.CompilerParams(
            dimension_semantics=("parallel",)),                # v7x: 2 cores
    )(x, mean_v, inv_v, ms, bs, m1, b1, m2, b2, fcw, fcb)

    return out[:, 0, :num_classes]


# --------------------------------------------------------------- parameters --

def make_params(key, c_hidden=8, num_classes=10):
    ks = jax.random.split(key, 8)

    def conv_w(k, cin, cout):
        fan_in = 9 * cin
        return (jax.random.normal(k, (9 * cin, cout), jnp.float32)
                / np.sqrt(fan_in)).astype(jnp.float32)

    # TODO(synk): real torchvision resnets carry BatchNorm; here BN is folded to
    # identity (synthetic weights), so conv+bias is the exact equivalent path.
    return {
        "stem_w": conv_w(ks[0], 3, c_hidden),
        "stem_b": 0.1 * jax.random.normal(ks[4], (c_hidden,), jnp.float32),
        "b1_w1": conv_w(ks[1], c_hidden, c_hidden),
        "b1_b1": 0.1 * jax.random.normal(ks[5], (c_hidden,), jnp.float32),
        "b1_w2": conv_w(ks[2], c_hidden, c_hidden),
        "b1_b2": 0.1 * jax.random.normal(ks[6], (c_hidden,), jnp.float32),
        "fc_w": (jax.random.normal(ks[3], (c_hidden, num_classes), jnp.float32)
                 / np.sqrt(c_hidden)).astype(jnp.float32),
        "fc_b": 0.1 * jax.random.normal(ks[7], (num_classes,), jnp.float32),
    }


# ---------------------------------------------------------- pure-JAX reference

def _im2col_3x3(x_nhwc):
    N, H, W, Cc = x_nhwc.shape
    xp = jnp.pad(x_nhwc, ((0, 0), (1, 1), (1, 1), (0, 0)))
    cols = [xp[:, i:i + H, j:j + W, :] for i in range(3) for j in range(3)]
    return jnp.concatenate(cols, axis=-1)


def reference_forward(x_nchw, params):
    x = jnp.transpose(x_nchw, (0, 2, 3, 1))
    mean = jnp.asarray(IMAGENET_MEAN).reshape(1, 1, 1, 3)
    std = jnp.asarray(IMAGENET_STD).reshape(1, 1, 1, 3)
    x = (x - mean) / std

    def conv(x, w, b, relu):
        out = _im2col_3x3(x) @ w + b
        return jnp.maximum(out, 0.0) if relu else out

    x = conv(x, params["stem_w"], params["stem_b"], True)
    idn = x
    y = conv(x, params["b1_w1"], params["b1_b1"], True)
    y = conv(y, params["b1_w2"], params["b1_b2"], False)
    x = jnp.maximum(y + idn, 0.0)
    x = jnp.mean(x, axis=(1, 2))
    return x @ params["fc_w"] + params["fc_b"]


# -------------------------------------------------------------------- main ---

if __name__ == "__main__":
    key = jax.random.PRNGKey(0)
    k_x, k_p = jax.random.split(key)

    # small NCHW batch like PyTorch, values in [0, 1]; 3 channels as required
    # by the ImageNet mean/std in the module.  N=4 -> 2 images per grid step,
    # grid=(2,) so both v7x TensorCores get work.
    x = jax.random.uniform(k_x, (4, 3, 16, 16), jnp.float32)
    params = make_params(k_p, c_hidden=8, num_classes=10)

    logits = jax.block_until_ready(warp_resnet_forward(x, params))
    ref = jax.block_until_ready(reference_forward(x, params))

    np.testing.assert_allclose(np.asarray(logits), np.asarray(ref),
                               rtol=2e-5, atol=2e-5)
    print("KERNEL_OK")
</pallas_src>

<mosaic_0001>
module attributes {stable_mosaic.version = 11 : i64} {
  func.func @fused_warp_resnet_kernel(%arg0: i32, %arg1: memref<2x16x128xf32, #tpu.memory_space<vmem>>, %arg2: memref<1x128xf32, #tpu.memory_space<vmem>>, %arg3: memref<1x128xf32, #tpu.memory_space<vmem>>, %arg4: memref<3x128x128xf32, #tpu.memory_space<vmem>>, %arg5: memref<1x128xf32, #tpu.memory_space<vmem>>, %arg6: memref<3x128x128xf32, #tpu.memory_space<vmem>>, %arg7: memref<1x128xf32, #tpu.memory_space<vmem>>, %arg8: memref<3x128x128xf32, #tpu.memory_space<vmem>>, %arg9: memref<1x128xf32, #tpu.memory_space<vmem>>, %arg10: memref<128x128xf32, #tpu.memory_space<vmem>>, %arg11: memref<1x128xf32, #tpu.memory_space<vmem>>, %arg12: memref<2x1x128xf32, #tpu.memory_space<vmem>>) attributes {dimension_semantics = [#tpu.dimension_semantics<parallel>], iteration_bounds = array<i64: 2>, scalar_prefetch = 0 : i64, scratch_operands = 0 : i64, tpu.core_type = #tpu.core_type<tc>, window_params = [{transform_indices = @transform_0, window_bounds = array<i64: 2, 16, 128>}, {pipeline_mode = #tpu.pipeline_mode<synchronous>, transform_indices = @transform_1, window_bounds = array<i64: 1, 128>}, {pipeline_mode = #tpu.pipeline_mode<synchronous>, transform_indices = @transform_2, window_bounds = array<i64: 1, 128>}, {pipeline_mode = #tpu.pipeline_mode<synchronous>, transform_indices = @transform_3, window_bounds = array<i64: 3, 128, 128>}, {pipeline_mode = #tpu.pipeline_mode<synchronous>, transform_indices = @transform_4, window_bounds = array<i64: 1, 128>}, {pipeline_mode = #tpu.pipeline_mode<synchronous>, transform_indices = @transform_5, window_bounds = array<i64: 3, 128, 128>}, {pipeline_mode = #tpu.pipeline_mode<synchronous>, transform_indices = @transform_6, window_bounds = array<i64: 1, 128>}, {pipeline_mode = #tpu.pipeline_mode<synchronous>, transform_indices = @transform_7, window_bounds = array<i64: 3, 128, 128>}, {pipeline_mode = #tpu.pipeline_mode<synchronous>, transform_indices = @transform_8, window_bounds = array<i64: 1, 128>}, {pipeline_mode = #tpu.pipeline_mode<synchronous>, transform_indices = @transform_9, window_bounds = array<i64: 128, 128>}, {pipeline_mode = #tpu.pipeline_mode<synchronous>, transform_indices = @transform_10, window_bounds = array<i64: 1, 128>}, {transform_indices = @transform_11, window_bounds = array<i64: 2, 1, 128>}]} {
    %cst = arith.constant 0.000000e+00 : f32
    %0 = vector.broadcast %cst : f32 to vector<1x128xf32>
    %c0 = arith.constant 0 : index
    %c0_0 = arith.constant 0 : index
    %c0_1 = arith.constant 0 : index
    %1 = vector.load %arg1[%c0, %c0_0, %c0_1] : memref<2x16x128xf32, #tpu.memory_space<vmem>>, vector<2x16x128xf32>
    %c0_2 = arith.constant 0 : index
    %c0_3 = arith.constant 0 : index
    %2 = vector.load %arg2[%c0_2, %c0_3] : memref<1x128xf32, #tpu.memory_space<vmem>>, vector<1x128xf32>
    %3 = vector.shape_cast %2 : vector<1x128xf32> to vector<1x1x128xf32>
    %4 = vector.broadcast %3 : vector<1x1x128xf32> to vector<2x16x128xf32>
    %5 = arith.subf %1, %4 : vector<2x16x128xf32>
    %c0_4 = arith.constant 0 : index
    %c0_5 = arith.constant 0 : index
    %6 = vector.load %arg3[%c0_4, %c0_5] : memref<1x128xf32, #tpu.memory_space<vmem>>, vector<1x128xf32>
    %7 = vector.shape_cast %6 : vector<1x128xf32> to vector<1x1x128xf32>
    %8 = vector.broadcast %7 : vector<1x1x128xf32> to vector<2x16x128xf32>
    %9 = arith.mulf %5, %8 : vector<2x16x128xf32>
    %10 = vector.shape_cast %9 : vector<2x16x128xf32> to vector<32x128xf32>
    %11 = vector.extract_strided_slice %10 {offsets = [0, 0], sizes = [16, 128], strides = [1, 1]} : vector<32x128xf32> to vector<16x128xf32>
    %12 = vector.extract_strided_slice %11 {offsets = [0, 0], sizes = [15, 128], strides = [1, 1]} : vector<16x128xf32> to vector<15x128xf32>
    %13 = tpu.concatenate %0, %12 in 0 : vector<1x128xf32>, vector<15x128xf32> -> vector<16x128xf32>
    %14 = vector.extract_strided_slice %10 {offsets = [16, 0], sizes = [16, 128], strides = [1, 1]} : vector<32x128xf32> to vector<16x128xf32>
    %15 = vector.extract_strided_slice %14 {offsets = [0, 0], sizes = [15, 128], strides = [1, 1]} : vector<16x128xf32> to vector<15x128xf32>
    %16 = tpu.concatenate %0, %15 in 0 : vector<1x128xf32>, vector<15x128xf32> -> vector<16x128xf32>
    %17 = tpu.concatenate %13, %16 in 0 : vector<16x128xf32>, vector<16x128xf32> -> vector<32x128xf32>
    %c0_6 = arith.constant 0 : index
    %c0_7 = arith.constant 0 : index
    %c0_8 = arith.constant 0 : index
    %18 = vector.load %arg4[%c0_6, %c0_7, %c0_8] : memref<3x128x128xf32, #tpu.memory_space<vmem>>, vector<1x128x128xf32>
    %19 = vector.shape_cast %18 : vector<1x128x128xf32> to vector<128x128xf32>
    %cst_9 = arith.constant dense<0.000000e+00> : vector<32x128xf32>
    %20 = tpu.matmul %17, %19, %cst_9 {dimension_numbers = #tpu.dot_dimension_numbers<[1], [0], [0], [1], [0, 0, 1, 1], [], []>} : vector<32x128xf32>, vector<128x128xf32>, vector<32x128xf32> -> vector<32x128xf32>
    %c1 = arith.constant 1 : index
    %c0_10 = arith.constant 0 : index
    %c0_11 = arith.constant 0 : index
    %21 = vector.load %arg4[%c1, %c0_10, %c0_11] : memref<3x128x128xf32, #tpu.memory_space<vmem>>, vector<1x128x128xf32>
    %22 = vector.shape_cast %21 : vector<1x128x128xf32> to vector<128x128xf32>
    %cst_12 = arith.constant dense<0.000000e+00> : vector<32x128xf32>
    %23 = tpu.matmul %10, %22, %cst_12 {dimension_numbers = #tpu.dot_dimension_numbers<[1], [0], [0], [1], [0, 0, 1, 1], [], []>} : vector<32x128xf32>, vector<128x128xf32>, vector<32x128xf32> -> vector<32x128xf32>
    %24 = arith.addf %20, %23 : vector<32x128xf32>
    %25 = vector.extract_strided_slice %10 {offsets = [0, 0], sizes = [16, 128], strides = [1, 1]} : vector<32x128xf32> to vector<16x128xf32>
    %26 = vector.extract_strided_slice %25 {offsets = [1, 0], sizes = [15, 128], strides = [1, 1]} : vector<16x128xf32> to vector<15x128xf32>
    %27 = tpu.concatenate %26, %0 in 0 : vector<15x128xf32>, vector<1x128xf32> -> vector<16x128xf32>
    %28 = vector.extract_strided_slice %10 {offsets = [16, 0], sizes = [16, 128], strides = [1, 1]} : vector<32x128xf32> to vector<16x128xf32>
    %29 = vector.extract_strided_slice %28 {offsets = [1, 0], sizes = [15, 128], strides = [1, 1]} : vector<16x128xf32> to vector<15x128xf32>
    %30 = tpu.concatenate %29, %0 in 0 : vector<15x128xf32>, vector<1x128xf32> -> vector<16x128xf32>
    %31 = tpu.concatenate %27, %30 in 0 : vector<16x128xf32>, vector<16x128xf32> -> vector<32x128xf32>
    %c2 = arith.constant 2 : index
    %c0_13 = arith.constant 0 : index
    %c0_14 = arith.constant 0 : index
    %32 = vector.load %arg4[%c2, %c0_13, %c0_14] : memref<3x128x128xf32, #tpu.memory_space<vmem>>, vector<1x128x128xf32>
    %33 = vector.shape_cast %32 : vector<1x128x128xf32> to vector<128x128xf32>
    %cst_15 = arith.constant dense<0.000000e+00> : vector<32x128xf32>
    %34 = tpu.matmul %31, %33, %cst_15 {dimension_numbers = #tpu.dot_dimension_numbers<[1], [0], [0], [1], [0, 0, 1, 1], [], []>} : vector<32x128xf32>, vector<128x128xf32>, vector<32x128xf32> -> vector<32x128xf32>
    %35 = arith.addf %24, %34 : vector<32x128xf32>
    %c0_16 = arith.constant 0 : index
    %c0_17 = arith.constant 0 : index
    %36 = vector.load %arg5[%c0_16, %c0_17] : memref<1x128xf32, #tpu.memory_space<vmem>>, vector<1x128xf32>
    %37 = vector.broadcast %36 : vector<1x128xf32> to vector<32x128xf32>
    %38 = arith.addf %35, %37 : vector<32x128xf32>
    %cst_18 = arith.constant 0.000000e+00 : f32
    %39 = vector.broadcast %cst_18 : f32 to vector<32x128xf32>
    %40 = arith.maximumf %38, %39 : vector<32x128xf32>
    %41 = vector.extract_strided_slice %40 {offsets = [0, 0], sizes = [16, 128], strides = [1, 1]} : vector<32x128xf32> to vector<16x128xf32>
    %42 = vector.extract_strided_slice %41 {offsets = [0, 0], sizes = [15, 128], strides = [1, 1]} : vector<16x128xf32> to vector<15x128xf32>
    %43 = tpu.concatenate %0, %42 in 0 : vector<1x128xf32>, vector<15x128xf32> -> vector<16x128xf32>
    %44 = vector.extract_strided_slice %40 {offsets = [16, 0], sizes = [16, 128], strides = [1, 1]} : vector<32x128xf32> to vector<16x128xf32>
    %45 = vector.extract_strided_slice %44 {offsets = [0, 0], sizes = [15, 128], strides = [1, 1]} : vector<16x128xf32> to vector<15x128xf32>
    %46 = tpu.concatenate %0, %45 in 0 : vector<1x128xf32>, vector<15x128xf32> -> vector<16x128xf32>
    %47 = tpu.concatenate %43, %46 in 0 : vector<16x128xf32>, vector<16x128xf32> -> vector<32x128xf32>
    %c0_19 = arith.constant 0 : index
    %c0_20 = arith.constant 0 : index
    %c0_21 = arith.constant 0 : index
    %48 = vector.load %arg6[%c0_19, %c0_20, %c0_21] : memref<3x128x128xf32, #tpu.memory_space<vmem>>, vector<1x128x128xf32>
    %49 = vector.shape_cast %48 : vector<1x128x128xf32> to vector<128x128xf32>
    %cst_22 = arith.constant dense<0.000000e+00> : vector<32x128xf32>
    %50 = tpu.matmul %47, %49, %cst_22 {dimension_numbers = #tpu.dot_dimension_numbers<[1], [0], [0], [1], [0, 0, 1, 1], [], []>} : vector<32x128xf32>, vector<128x128xf32>, vector<32x128xf32> -> vector<32x128xf32>
    %c1_23 = arith.constant 1 : index
    %c0_24 = arith.constant 0 : index
    %c0_25 = arith.constant 0 : index
    %51 = vector.load %arg6[%c1_23, %c0_24, %c0_25] : memref<3x128x128xf32, #tpu.memory_space<vmem>>, vector<1x128x128xf32>
    %52 = vector.shape_cast %51 : vector<1x128x128xf32> to vector<128x128xf32>
    %cst_26 = arith.constant dense<0.000000e+00> : vector<32x128xf32>
    %53 = tpu.matmul %40, %52, %cst_26 {dimension_numbers = #tpu.dot_dimension_numbers<[1], [0], [0], [1], [0, 0, 1, 1], [], []>} : vector<32x128xf32>, vector<128x128xf32>, vector<32x128xf32> -> vector<32x128xf32>
    %54 = arith.addf %50, %53 : vector<32x128xf32>
    %55 = vector.extract_strided_slice %40 {offsets = [0, 0], sizes = [16, 128], strides = [1, 1]} : vector<32x128xf32> to vector<16x128xf32>
    %56 = vector.extract_strided_slice %55 {offsets = [1, 0], sizes = [15, 128], strides = [1, 1]} : vector<16x128xf32> to vector<15x128xf32>
    %57 = tpu.concatenate %56, %0 in 0 : vector<15x128xf32>, vector<1x128xf32> -> vector<16x128xf32>
    %58 = vector.extract_strided_slice %40 {offsets = [16, 0], sizes = [16, 128], strides = [1, 1]} : vector<32x128xf32> to vector<16x128xf32>
    %59 = vector.extract_strided_slice %58 {offsets = [1, 0], sizes = [15, 128], strides = [1, 1]} : vector<16x128xf32> to vector<15x128xf32>
    %60 = tpu.concatenate %59, %0 in 0 : vector<15x128xf32>, vector<1x128xf32> -> vector<16x128xf32>
    %61 = tpu.concatenate %57, %60 in 0 : vector<16x128xf32>, vector<16x128xf32> -> vector<32x128xf32>
    %c2_27 = arith.constant 2 : index
    %c0_28 = arith.constant 0 : index
    %c0_29 = arith.constant 0 : index
    %62 = vector.load %arg6[%c2_27, %c0_28, %c0_29] : memref<3x128x128xf32, #tpu.memory_space<vmem>>, vector<1x128x128xf32>
    %63 = vector.shape_cast %62 : vector<1x128x128xf32> to vector<128x128xf32>
    %cst_30 = arith.constant dense<0.000000e+00> : vector<32x128xf32>
    %64 = tpu.matmul %61, %63, %cst_30 {dimension_numbers = #tpu.dot_dimension_numbers<[1], [0], [0], [1], [0, 0, 1, 1], [], []>} : vector<32x128xf32>, vector<128x128xf32>, vector<32x128xf32> -> vector<32x128xf32>
    %65 = arith.addf %54, %64 : vector<32x128xf32>
    %c0_31 = arith.constant 0 : index
    %c0_32 = arith.constant 0 : index
    %66 = vector.load %arg7[%c0_31, %c0_32] : memref<1x128xf32, #tpu.memory_space<vmem>>, vector<1x128xf32>
    %67 = vector.broadcast %66 : vector<1x128xf32> to vector<32x128xf32>
    %68 = arith.addf %65, %67 : vector<32x128xf32>
    %cst_33 = arith.constant 0.000000e+00 : f32
    %69 = vector.broadcast %cst_33 : f32 to vector<32x128xf32>
    %70 = arith.maximumf %68, %69 : vector<32x128xf32>
    %71 = vector.extract_strided_slice %70 {offsets = [0, 0], sizes = [16, 128], strides = [1, 1]} : vector<32x128xf32> to vector<16x128xf32>
    %72 = vector.extract_strided_slice %71 {offsets = [0, 0], sizes = [15, 128], strides = [1, 1]} : vector<16x128xf32> to vector<15x128xf32>
    %73 = tpu.concatenate %0, %72 in 0 : vector<1x128xf32>, vector<15x128xf32> -> vector<16x128xf32>
    %74 = vector.extract_strided_slice %70 {offsets = [16, 0], sizes = [16, 128], strides = [1, 1]} : vector<32x128xf32> to vector<16x128xf32>
    %75 = vector.extract_strided_slice %74 {offsets = [0, 0], sizes = [15, 128], strides = [1, 1]} : vector<16x128xf32> to vector<15x128xf32>
    %76 = tpu.concatenate %0, %75 in 0 : vector<1x128xf32>, vector<15x128xf32> -> vector<16x128xf32>
    %77 = tpu.concatenate %73, %76 in 0 : vector<16x128xf32>, vector<16x128xf32> -> vector<32x128xf32>
    %c0_34 = arith.constant 0 : index
    %c0_35 = arith.constant 0 : index
    %c0_36 = arith.constant 0 : index
    %78 = vector.load %arg8[%c0_34, %c0_35, %c0_36] : memref<3x128x128xf32, #tpu.memory_space<vmem>>, vector<1x128x128xf32>
    %79 = vector.shape_cast %78 : vector<1x128x128xf32> to vector<128x128xf32>
    %cst_37 = arith.constant dense<0.000000e+00> : vector<32x128xf32>
    %80 = tpu.matmul %77, %79, %cst_37 {dimension_numbers = #tpu.dot_dimension_numbers<[1], [0], [0], [1], [0, 0, 1, 1], [], []>} : vector<32x128xf32>, vector<128x128xf32>, vector<32x128xf32> -> vector<32x128xf32>
    %c1_38 = arith.constant 1 : index
    %c0_39 = arith.constant 0 : index
    %c0_40 = arith.constant 0 : index
    %81 = vector.load %arg8[%c1_38, %c0_39, %c0_40] : memref<3x128x128xf32, #tpu.memory_space<vmem>>, vector<1x128x128xf32>
    %82 = vector.shape_cast %81 : vector<1x128x128xf32> to vector<128x128xf32>
    %cst_41 = arith.constant dense<0.000000e+00> : vector<32x128xf32>
    %83 = tpu.matmul %70, %82, %cst_41 {dimension_numbers = #tpu.dot_dimension_numbers<[1], [0], [0], [1], [0, 0, 1, 1], [], []>} : vector<32x128xf32>, vector<128x128xf32>, vector<32x128xf32> -> vector<32x128xf32>
    %84 = arith.addf %80, %83 : vector<32x128xf32>
    %85 = vector.extract_strided_slice %70 {offsets = [0, 0], sizes = [16, 128], strides = [1, 1]} : vector<32x128xf32> to vector<16x128xf32>
    %86 = vector.extract_strided_slice %85 {offsets = [1, 0], sizes = [15, 128], strides = [1, 1]} : vector<16x128xf32> to vector<15x128xf32>
    %87 = tpu.concatenate %86, %0 in 0 : vector<15x128xf32>, vector<1x128xf32> -> vector<16x128xf32>
    %88 = vector.extract_strided_slice %70 {offsets = [16, 0], sizes = [16, 128], strides = [1, 1]} : vector<32x128xf32> to vector<16x128xf32>
    %89 = vector.extract_strided_slice %88 {offsets = [1, 0], sizes = [15, 128], strides = [1, 1]} : vector<16x128xf32> to vector<15x128xf32>
    %90 = tpu.concatenate %89, %0 in 0 : vector<15x128xf32>, vector<1x128xf32> -> vector<16x128xf32>
    %91 = tpu.concatenate %87, %90 in 0 : vector<16x128xf32>, vector<16x128xf32> -> vector<32x128xf32>
    %c2_42 = arith.constant 2 : index
    %c0_43 = arith.constant 0 : index
    %c0_44 = arith.constant 0 : index
    %92 = vector.load %arg8[%c2_42, %c0_43, %c0_44] : memref<3x128x128xf32, #tpu.memory_space<vmem>>, vector<1x128x128xf32>
    %93 = vector.shape_cast %92 : vector<1x128x128xf32> to vector<128x128xf32>
    %cst_45 = arith.constant dense<0.000000e+00> : vector<32x128xf32>
    %94 = tpu.matmul %91, %93, %cst_45 {dimension_numbers = #tpu.dot_dimension_numbers<[1], [0], [0], [1], [0, 0, 1, 1], [], []>} : vector<32x128xf32>, vector<128x128xf32>, vector<32x128xf32> -> vector<32x128xf32>
    %95 = arith.addf %84, %94 : vector<32x128xf32>
    %c0_46 = arith.constant 0 : index
    %c0_47 = arith.constant 0 : index
    %96 = vector.load %arg9[%c0_46, %c0_47] : memref<1x128xf32, #tpu.memory_space<vmem>>, vector<1x128xf32>
    %97 = vector.broadcast %96 : vector<1x128xf32> to vector<32x128xf32>
    %98 = arith.addf %95, %97 : vector<32x128xf32>
    %99 = arith.addf %98, %40 : vector<32x128xf32>
    %cst_48 = arith.constant 0.000000e+00 : f32
    %100 = vector.broadcast %cst_48 : f32 to vector<32x128xf32>
    %101 = arith.maximumf %99, %100 : vector<32x128xf32>
    %102 = vector.extract_strided_slice %101 {offsets = [0, 0], sizes = [16, 128], strides = [1, 1]} : vector<32x128xf32> to vector<16x128xf32>
    %cst_49 = arith.constant dense<0.000000e+00> : vector<128xf32>
    %103 = vector.multi_reduction <add>, %102, %cst_49 [0] : vector<16x128xf32> to vector<128xf32>
    %104 = vector.shape_cast %103 : vector<128xf32> to vector<1x128xf32>
    %105 = vector.extract_strided_slice %101 {offsets = [16, 0], sizes = [16, 128], strides = [1, 1]} : vector<32x128xf32> to vector<16x128xf32>
    %cst_50 = arith.constant dense<0.000000e+00> : vector<128xf32>
    %106 = vector.multi_reduction <add>, %105, %cst_50 [0] : vector<16x128xf32> to vector<128xf32>
    %107 = vector.shape_cast %106 : vector<128xf32> to vector<1x128xf32>
    %108 = tpu.concatenate %104, %107 in 0 : vector<1x128xf32>, vector<1x128xf32> -> vector<2x128xf32>
    %cst_51 = arith.constant 3.906250e-03 : f32
    %109 = vector.broadcast %cst_51 : f32 to vector<2x128xf32>
    %110 = arith.mulf %108, %109 : vector<2x128xf32>
    %c0_52 = arith.constant 0 : index
    %c0_53 = arith.constant 0 : index
    %111 = vector.load %arg10[%c0_52, %c0_53] : memref<128x128xf32, #tpu.memory_space<vmem>>, vector<128x128xf32>
    %cst_54 = arith.constant dense<0.000000e+00> : vector<2x128xf32>
    %112 = tpu.matmul %110, %111, %cst_54 {dimension_numbers = #tpu.dot_dimension_numbers<[1], [0], [0], [1], [0, 0, 1, 1], [], []>} : vector<2x128xf32>, vector<128x128xf32>, vector<2x128xf32> -> vector<2x128xf32>
    %c0_55 = arith.constant 0 : index
    %c0_56 = arith.constant 0 : index
    %113 = vector.load %arg11[%c0_55, %c0_56] : memref<1x128xf32, #tpu.memory_space<vmem>>, vector<1x128xf32>
    %114 = vector.broadcast %113 : vector<1x128xf32> to vector<2x128xf32>
    %115 = arith.addf %112, %114 : vector<2x128xf32>
    %116 = vector.shape_cast %115 : vector<2x128xf32> to vector<2x1x128xf32>
    %c0_57 = arith.constant 0 : index
    %c0_58 = arith.constant 0 : index
    %c0_59 = arith.constant 0 : index
    %117 = vector.load %arg12[%c0_57, %c0_58, %c0_59] : memref<2x1x128xf32, #tpu.memory_space<vmem>>, vector<2x1x128xf32>
    tpu.vector_store %arg12[%c0_57, %c0_58, %c0_59], %116 {strides = array<i32>} : memref<2x1x128xf32, #tpu.memory_space<vmem>>, vector<2x1x128xf32>,
    return
  }
  func.func @transform_0(%arg0: i32) -> (i32, i32, i32) {
    %c0_i32 = arith.constant 0 : i32
    %c0_i32_0 = arith.constant 0 : i32
    %c0_i32_1 = arith.constant 0 : i32
    return %arg0, %c0_i32, %c0_i32_0 : i32, i32, i32
  }
  func.func @transform_1(%arg0: i32) -> (i32, i32) {
    %c0_i32 = arith.constant 0 : i32
    %c0_i32_0 = arith.constant 0 : i32
    %c0_i32_1 = arith.constant 0 : i32
    return %c0_i32, %c0_i32_0 : i32, i32
  }
  func.func @transform_2(%arg0: i32) -> (i32, i32) {
    %c0_i32 = arith.constant 0 : i32
    %c0_i32_0 = arith.constant 0 : i32
    %c0_i32_1 = arith.constant 0 : i32
    return %c0_i32, %c0_i32_0 : i32, i32
  }
  func.func @transform_3(%arg0: i32) -> (i32, i32, i32) {
    %c0_i32 = arith.constant 0 : i32
    %c0_i32_0 = arith.constant 0 : i32
    %c0_i32_1 = arith.constant 0 : i32
    %c0_i32_2 = arith.constant 0 : i32
    return %c0_i32, %c0_i32_0, %c0_i32_1 : i32, i32, i32
  }
  func.func @transform_4(%arg0: i32) -> (i32, i32) {
    %c0_i32 = arith.constant 0 : i32
    %c0_i32_0 = arith.constant 0 : i32
    %c0_i32_1 = arith.constant 0 : i32
    return %c0_i32, %c0_i32_0 : i32, i32
  }
  func.func @transform_5(%arg0: i32) -> (i32, i32, i32) {
    %c0_i32 = arith.constant 0 : i32
    %c0_i32_0 = arith.constant 0 : i32
    %c0_i32_1 = arith.constant 0 : i32
    %c0_i32_2 = arith.constant 0 : i32
    return %c0_i32, %c0_i32_0, %c0_i32_1 : i32, i32, i32
  }
  func.func @transform_6(%arg0: i32) -> (i32, i32) {
    %c0_i32 = arith.constant 0 : i32
    %c0_i32_0 = arith.constant 0 : i32
    %c0_i32_1 = arith.constant 0 : i32
    return %c0_i32, %c0_i32_0 : i32, i32
  }
  func.func @transform_7(%arg0: i32) -> (i32, i32, i32) {
    %c0_i32 = arith.constant 0 : i32
    %c0_i32_0 = arith.constant 0 : i32
    %c0_i32_1 = arith.constant 0 : i32
    %c0_i32_2 = arith.constant 0 : i32
    return %c0_i32, %c0_i32_0, %c0_i32_1 : i32, i32, i32
  }
  func.func @transform_8(%arg0: i32) -> (i32, i32) {
    %c0_i32 = arith.constant 0 : i32
    %c0_i32_0 = arith.constant 0 : i32
    %c0_i32_1 = arith.constant 0 : i32
    return %c0_i32, %c0_i32_0 : i32, i32
  }
  func.func @transform_9(%arg0: i32) -> (i32, i32) {
    %c0_i32 = arith.constant 0 : i32
    %c0_i32_0 = arith.constant 0 : i32
    %c0_i32_1 = arith.constant 0 : i32
    return %c0_i32, %c0_i32_0 : i32, i32
  }
  func.func @transform_10(%arg0: i32) -> (i32, i32) {
    %c0_i32 = arith.constant 0 : i32
    %c0_i32_0 = arith.constant 0 : i32
    %c0_i32_1 = arith.constant 0 : i32
    return %c0_i32, %c0_i32_0 : i32, i32
  }
  func.func @transform_11(%arg0: i32) -> (i32, i32, i32) {
    %c0_i32 = arith.constant 0 : i32
    %c0_i32_0 = arith.constant 0 : i32
    %c0_i32_1 = arith.constant 0 : i32
    return %arg0, %c0_i32, %c0_i32_0 : i32, i32, i32
  }
}

</mosaic_0001>

<llo_original>
// kernel: tpu_custom_call.1
$region0: #{tpu_custom_call.1}
  #allocation0 [shape = 'u32[]', space=smem, size = 0x4, offset = 0x4, fixed_abs, tag = 'smem constant byte address 0x4 - core index']
  #allocation1 [shape = 'u32[144,128]{1,0:T(1,128)}', space=vmem, size = 0x12000, scoped, tag = 'internal scratch']
  %s0 = inlined_call_operand.hbm [shape: f32[4,16,128], index: 0, kind: input, shape index: {}]
  %s1 = inlined_call_operand.vmem [shape: f32[1,128], index: 1, kind: input, shape index: {}]
  %s2 = inlined_call_operand.vmem [shape: f32[1,128], index: 2, kind: input, shape index: {}]
  %s3 = inlined_call_operand.hbm [shape: f32[3,128,128], index: 3, kind: input, shape index: {}]
  %s4 = inlined_call_operand.vmem [shape: f32[1,128], index: 4, kind: input, shape index: {}]
  %s5 = inlined_call_operand.hbm [shape: f32[3,128,128], index: 5, kind: input, shape index: {}]
  %s6 = inlined_call_operand.vmem [shape: f32[1,128], index: 6, kind: input, shape index: {}]
  %s7 = inlined_call_operand.hbm [shape: f32[3,128,128], index: 7, kind: input, shape index: {}]
  %s8 = inlined_call_operand.vmem [shape: f32[1,128], index: 8, kind: input, shape index: {}]
  %s9 = inlined_call_operand.hbm [shape: f32[128,128], index: 9, kind: input, shape index: {}]
  %s10 = inlined_call_operand.vmem [shape: f32[1,128], index: 10, kind: input, shape index: {}]
  %s11 = inlined_call_operand.hbm [shape: f32[4,1,128], index: 11, kind: output, shape index: {}]
  %s12 = sld [smem:[#allocation0]]
  $region97: #{tpu_custom_call.1} parent=0
    _
  %s14 = ssub.s32 1, %s12
  %s15 = scalar_select 0, %s14, %s12
  $region1: #{tpu_custom_call.1} parent=0
    #allocation2 [shape = 'u8[32768]{0}', space=vmem, size = 0x8000, scoped, tag = 'input window, operand 0']
    #allocation3 [shape = 's32[2]{0}', space=sflag, size = 0x8, scoped, tag = 'scoped memory for tpu_custom_call.1']
    #allocation4 [shape = 's32[2]{0}', space=sflag, size = 0x8, scoped, tag = 'scoped memory for tpu_custom_call.1']
    #allocation5 [shape = 'u8[196608]{0}', space=vmem, size = 0x30000, scoped, tag = 'input window, operand 3, single buffered']
    #allocation6 [shape = 's32[1]{0}', space=sflag, size = 0x4, scoped, tag = 'scoped memory for tpu_custom_call.1']
    #allocation7 [shape = 'u8[196608]{0}', space=vmem, size = 0x30000, scoped, tag = 'input window, operand 5, single buffered']
    #allocation8 [shape = 'u8[196608]{0}', space=vmem, size = 0x30000, scoped, tag = 'input window, operand 7, single buffered']
    #allocation9 [shape = 's32[1]{0}', space=sflag, size = 0x4, scoped, tag = 'scoped memory for tpu_custom_call.1']
    #allocation10 [shape = 'u8[65536]{0}', space=vmem, size = 0x10000, scoped, tag = 'input window, operand 9, single buffered']
    #allocation11 [shape = 'u8[2048]{0}', space=vmem, size = 0x800, scoped, tag = 'output window, operand 0']
    %16 = vsyncpa [#allocation3], 0
    %s17 = scalar_lea.sflag [#allocation3], 1
    %18 = vsyncpa %s17, 0
    %19 = vsyncpa [#allocation6], 0
    %20 = vsyncpa [#allocation9], 0
    %21 = vsyncpa [#allocation4], 0
    %s22 = scalar_lea.sflag [#allocation4], 1
    %23 = vsyncpa %s22, 0
    loop: start=0, step=1, limit=4
    $region2: #{tpu_custom_call.1} parent=1 // loop_pre_header
      _
    $region3: #{tpu_custom_call.1} parent=1 // loop_header
      %s25 = sphi 0, %s29
      %p26 = scmp.ge.s32.totalorder %s25, 4
      %s35 = sphi 0, %s37
      %s38 = sphi 0, %s35
      %s39 = sphi 0, %s38
      %s55 = sphi 0, %s39
      %s59 = sphi 0, %s59
      %s61 = sphi 0, %s59
      %s62 = sphi 0, %s61
      %s76 = sphi 0, %s62
      %s80 = sphi 0, %s80
      %s82 = sphi 0, %s80
      %s83 = sphi 0, %s82
      %s97 = sphi 0, %s83
      %s101 = sphi 0, %s101
      %s103 = sphi 0, %s101
      %s104 = sphi 0, %s103
      %s118 = sphi 0, %s104
      %s122 = sphi 0, %s122
      %s124 = sphi 0, %s122
      %s125 = sphi 0, %s124
      %s139 = sphi 0, %s125
      %s143 = sphi 0, %s143
      %s145 = sphi 0, %s143
      %s146 = sphi 0, %s145
      %s160 = sphi 0, %s146
      %s164 = sphi 0, %s164
      %s166 = sphi 0, %s164
      %s167 = sphi 0, %s166
      %s181 = sphi 0, %s167
      %s185 = sphi 0, %s185
      %s187 = sphi 0, %s185
      %s188 = sphi 0, %s187
      %s202 = sphi 0, %s188
      %s206 = sphi 0, %s206
      %s208 = sphi 0, %s206
      %s209 = sphi 0, %s208
      %s223 = sphi 0, %s209
      %s227 = sphi 0, %s227
      %s229 = sphi 0, %s227
      %s230 = sphi 0, %s229
      %s244 = sphi 0, %s230
      %s248 = sphi 0, %s248
      %s250 = sphi 0, %s248
      %s251 = sphi 0, %s250
      %s265 = sphi 0, %s251
      %s271 = sphi 0, %s273
      %s274 = sphi 0, %s271
      %s275 = sphi 0, %s274
      %s291 = sphi 0, %s275
    $region4: #{tpu_custom_call.1} parent=1 // loop_header_branch
      %28 = sbr.rel (%p26) target = $region8
    $region5: #{tpu_custom_call.1} parent=1 // loop_body
      %s30 = ssub.s32 %s25, 1
      %s31 = ssub.s32 %s25, 2
      %s32 = sadd.s32 %s25, 1
      %s33 = ssub.s32 %s25, %s32
      %p34 = scmp.eq.s32.totalorder %s33, 0
      %s36 = sadd.s32 %s35, 1
      %s37 = scalar_select %p34, %s35, %s36
      %p40 = pneg %p34
      %p41 = scmp.eq.s32.totalorder %s25, 1
      %p42 = por %p40, %p41
      %p43 = scmp.ne.s32.totalorder %s35, %s38
      %p44 = scmp.eq.s32.totalorder %s25, 0
      %p45 = por %p43, %p44
      %p46 = scmp.ne.s32.totalorder %s35, %s38
      %p47 = scmp.eq.s32.totalorder %s30, 1
      %p48 = por %p46, %p47
      %p49 = scmp.ne.s32.totalorder %s38, %s39
      %p50 = scmp.eq.s32.totalorder %s30, 0
      %p51 = por %p49, %p50
      %p52 = scmp.ne.s32.totalorder %s38, %s39
      %p53 = scmp.eq.s32.totalorder %s31, 1
      %p54 = por %p52, %p53
      %p56 = scmp.ne.s32.totalorder %s39, %s55
      %p57 = scmp.eq.s32.totalorder %s31, 0
      %p58 = por %p56, %p57
      %s60 = sadd.s32 %s59, 1
      %p63 = scmp.eq.s32.totalorder %s25, 1
      %p64 = scmp.ne.s32.totalorder %s59, %s61
      %p65 = scmp.eq.s32.totalorder %s25, 0
      %p66 = por %p64, %p65
      %p67 = scmp.ne.s32.totalorder %s59, %s61
      %p68 = scmp.eq.s32.totalorder %s30, 1
      %p69 = por %p67, %p68
      %p70 = scmp.ne.s32.totalorder %s61, %s62
      %p71 = scmp.eq.s32.totalorder %s30, 0
      %p72 = por %p70, %p71
      %p73 = scmp.ne.s32.totalorder %s61, %s62
      %p74 = scmp.eq.s32.totalorder %s31, 1
      %p75 = por %p73, %p74
      %p77 = scmp.ne.s32.totalorder %s62, %s76
      %p78 = scmp.eq.s32.totalorder %s31, 0
      %p79 = por %p77, %p78
      %s81 = sadd.s32 %s80, 1
      %p84 = scmp.eq.s32.totalorder %s25, 1
      %p85 = scmp.ne.s32.totalorder %s80, %s82
      %p86 = scmp.eq.s32.totalorder %s25, 0
      %p87 = por %p85, %p86
      %p88 = scmp.ne.s32.totalorder %s80, %s82
      %p89 = scmp.eq.s32.totalorder %s30, 1
      %p90 = por %p88, %p89
      %p91 = scmp.ne.s32.totalorder %s82, %s83
      %p92 = scmp.eq.s32.totalorder %s30, 0
      %p93 = por %p91, %p92
      %p94 = scmp.ne.s32.totalorder %s82, %s83
      %p95 = scmp.eq.s32.totalorder %s31, 1
      %p96 = por %p94, %p95
      %p98 = scmp.ne.s32.totalorder %s83, %s97
      %p99 = scmp.eq.s32.totalorder %s31, 0
      %p100 = por %p98, %p99
      %s102 = sadd.s32 %s101, 1
      %p105 = scmp.eq.s32.totalorder %s25, 1
      %p106 = scmp.ne.s32.totalorder %s101, %s103
      %p107 = scmp.eq.s32.totalorder %s25, 0
      %p108 = por %p106, %p107
      %p109 = scmp.ne.s32.totalorder %s101, %s103
      %p110 = scmp.eq.s32.totalorder %s30, 1
      %p111 = por %p109, %p110
      %p112 = scmp.ne.s32.totalorder %s103, %s104
      %p113 = scmp.eq.s32.totalorder %s30, 0
      %p114 = por %p112, %p113
      %p115 = scmp.ne.s32.totalorder %s103, %s104
      %p116 = scmp.eq.s32.totalorder %s31, 1
      %p117 = por %p115, %p116
      %p119 = scmp.ne.s32.totalorder %s104, %s118
      %p120 = scmp.eq.s32.totalorder %s31, 0
      %p121 = por %p119, %p120
      %s123 = sadd.s32 %s122, 1
      %p126 = scmp.eq.s32.totalorder %s25, 1
      %p127 = scmp.ne.s32.totalorder %s122, %s124
      %p128 = scmp.eq.s32.totalorder %s25, 0
      %p129 = por %p127, %p128
      %p130 = scmp.ne.s32.totalorder %s122, %s124
      %p131 = scmp.eq.s32.totalorder %s30, 1
      %p132 = por %p130, %p131
      %p133 = scmp.ne.s32.totalorder %s124, %s125
      %p134 = scmp.eq.s32.totalorder %s30, 0
      %p135 = por %p133, %p134
      %p136 = scmp.ne.s32.totalorder %s124, %s125
      %p137 = scmp.eq.s32.totalorder %s31, 1
      %p138 = por %p136, %p137
      %p140 = scmp.ne.s32.totalorder %s125, %s139
      %p141 = scmp.eq.s32.totalorder %s31, 0
      %p142 = por %p140, %p141
      %s144 = sadd.s32 %s143, 1
      %p147 = scmp.eq.s32.totalorder %s25, 1
      %p148 = scmp.ne.s32.totalorder %s143, %s145
      %p149 = scmp.eq.s32.totalorder %s25, 0
      %p150 = por %p148, %p149
      %p151 = scmp.ne.s32.totalorder %s143, %s145
      %p152 = scmp.eq.s32.totalorder %s30, 1
      %p153 = por %p151, %p152
      %p154 = scmp.ne.s32.totalorder %s145, %s146
      %p155 = scmp.eq.s32.totalorder %s30, 0
      %p156 = por %p154, %p155
      %p157 = scmp.ne.s32.totalorder %s145, %s146
      %p158 = scmp.eq.s32.totalorder %s31, 1
      %p159 = por %p157, %p158
      %p161 = scmp.ne.s32.totalorder %s146, %s160
      %p162 = scmp.eq.s32.totalorder %s31, 0
      %p163 = por %p161, %p162
      %s165 = sadd.s32 %s164, 1
      %p168 = scmp.eq.s32.totalorder %s25, 1
      %p169 = scmp.ne.s32.totalorder %s164, %s166
      %p170 = scmp.eq.s32.totalorder %s25, 0
      %p171 = por %p169, %p170
      %p172 = scmp.ne.s32.totalorder %s164, %s166
      %p173 = scmp.eq.s32.totalorder %s30, 1
      %p174 = por %p172, %p173
      %p175 = scmp.ne.s32.totalorder %s166, %s167
      %p176 = scmp.eq.s32.totalorder %s30, 0
      %p177 = por %p175, %p176
      %p178 = scmp.ne.s32.totalorder %s166, %s167
      %p179 = scmp.eq.s32.totalorder %s31, 1
      %p180 = por %p178, %p179
      %p182 = scmp.ne.s32.totalorder %s167, %s181
      %p183 = scmp.eq.s32.totalorder %s31, 0
      %p184 = por %p182, %p183
      %s186 = sadd.s32 %s185, 1
      %p189 = scmp.eq.s32.totalorder %s25, 1
      %p190 = scmp.ne.s32.totalorder %s185, %s187
      %p191 = scmp.eq.s32.totalorder %s25, 0
      %p192 = por %p190, %p191
      %p193 = scmp.ne.s32.totalorder %s185, %s187
      %p194 = scmp.eq.s32.totalorder %s30, 1
      %p195 = por %p193, %p194
      %p196 = scmp.ne.s32.totalorder %s187, %s188
      %p197 = scmp.eq.s32.totalorder %s30, 0
      %p198 = por %p196, %p197
      %p199 = scmp.ne.s32.totalorder %s187, %s188
      %p200 = scmp.eq.s32.totalorder %s31, 1
      %p201 = por %p199, %p200
      %p203 = scmp.ne.s32.totalorder %s188, %s202
      %p204 = scmp.eq.s32.totalorder %s31, 0
      %p205 = por %p203, %p204
      %s207 = sadd.s32 %s206, 1
      %p210 = scmp.eq.s32.totalorder %s25, 1
      %p211 = scmp.ne.s32.totalorder %s206, %s208
      %p212 = scmp.eq.s32.totalorder %s25, 0
      %p213 = por %p211, %p212
      %p214 = scmp.ne.s32.totalorder %s206, %s208
      %p215 = scmp.eq.s32.totalorder %s30, 1
      %p216 = por %p214, %p215
      %p217 = scmp.ne.s32.totalorder %s208, %s209
      %p218 = scmp.eq.s32.totalorder %s30, 0
      %p219 = por %p217, %p218
      %p220 = scmp.ne.s32.totalorder %s208, %s209
      %p221 = scmp.eq.s32.totalorder %s31, 1
      %p222 = por %p220, %p221
      %p224 = scmp.ne.s32.totalorder %s209, %s223
      %p225 = scmp.eq.s32.totalorder %s31, 0
      %p226 = por %p224, %p225
      %s228 = sadd.s32 %s227, 1
      %p231 = scmp.eq.s32.totalorder %s25, 1
      %p232 = scmp.ne.s32.totalorder %s227, %s229
      %p233 = scmp.eq.s32.totalorder %s25, 0
      %p234 = por %p232, %p233
      %p235 = scmp.ne.s32.totalorder %s227, %s229
      %p236 = scmp.eq.s32.totalorder %s30, 1
      %p237 = por %p235, %p236
      %p238 = scmp.ne.s32.totalorder %s229, %s230
      %p239 = scmp.eq.s32.totalorder %s30, 0
      %p240 = por %p238, %p239
      %p241 = scmp.ne.s32.totalorder %s229, %s230
      %p242 = scmp.eq.s32.totalorder %s31, 1
      %p243 = por %p241, %p242
      %p245 = scmp.ne.s32.totalorder %s230, %s244
      %p246 = scmp.eq.s32.totalorder %s31, 0
      %p247 = por %p245, %p246
      %s249 = sadd.s32 %s248, 1
      %p252 = scmp.eq.s32.totalorder %s25, 1
      %p253 = scmp.ne.s32.totalorder %s248, %s250
      %p254 = scmp.eq.s32.totalorder %s25, 0
      %p255 = por %p253, %p254
      %p256 = scmp.ne.s32.totalorder %s248, %s250
      %p257 = scmp.eq.s32.totalorder %s30, 1
      %p258 = por %p256, %p257
      %p259 = scmp.ne.s32.totalorder %s250, %s251
      %p260 = scmp.eq.s32.totalorder %s30, 0
      %p261 = por %p259, %p260
      %p262 = scmp.ne.s32.totalorder %s250, %s251
      %p263 = scmp.eq.s32.totalorder %s31, 1
      %p264 = por %p262, %p263
      %p266 = scmp.ne.s32.totalorder %s251, %s265
      %p267 = scmp.eq.s32.totalorder %s31, 0
      %p268 = por %p266, %p267
      %s269 = ssub.s32 %s25, %s32
      %p270 = scmp.eq.s32.totalorder %s269, 0
      %s272 = sadd.s32 %s271, 1
      %s273 = scalar_select %p270, %s271, %s272
      %p276 = pneg %p270
      %p277 = scmp.eq.s32.totalorder %s25, 1
      %p278 = por %p276, %p277
      %p279 = scmp.ne.s32.totalorder %s271, %s274
      %p280 = scmp.eq.s32.totalorder %s25, 0
      %p281 = por %p279, %p280
      %p282 = scmp.ne.s32.totalorder %s271, %s274
      %p283 = scmp.eq.s32.totalorder %s30, 1
      %p284 = por %p282, %p283
      %p285 = scmp.ne.s32.totalorder %s274, %s275
      %p286 = scmp.eq.s32.totalorder %s30, 0
      %p287 = por %p285, %p286
      %p288 = scmp.ne.s32.totalorder %s274, %s275
      %p289 = scmp.eq.s32.totalorder %s31, 1
      %p290 = por %p288, %p289
      %p292 = scmp.ne.s32.totalorder %s275, %s291
      %p293 = scmp.eq.s32.totalorder %s31, 0
      %p294 = por %p292, %p293
      %p295 = scmp.le.s32.totalorder 1, %s25
      %p296 = scmp.lt.s32.totalorder %s25, 3
      %p297 = pnand %p295, %p296
      %p298 = pneg %p297
      // Predicated region
      $region9: #{tpu_custom_call.1} parent=5 // pred_check
        _
      $region10: #{tpu_custom_call.1} parent=5 // pred_check_branch
        %300 = sbr.rel (%p297) target = $region12
      $region11: #{tpu_custom_call.1} parent=5 // pred_region
        %s301 = ssub.s32 %s25, 1
        // Predicated region
        $region13: #{tpu_custom_call.1} parent=11 // pred_check
          %p302 = pneg %p72
        $region14: #{tpu_custom_call.1} parent=11 // pred_check_branch
          %304 = sbr.rel (%p302) target = $region16
        $region15: #{tpu_custom_call.1} parent=11 // pred_region
          _
        $region16: #{tpu_custom_call.1} parent=11 // pred_fallthru
          _
        // Predicated region
        $region17: #{tpu_custom_call.1} parent=11 // pred_check
          %p305 = pneg %p93
        $region18: #{tpu_custom_call.1} parent=11 // pred_check_branch
          %307 = sbr.rel (%p305) target = $region20
        $region19: #{tpu_custom_call.1} parent=11 // pred_region
          _
        $region20: #{tpu_custom_call.1} parent=11 // pred_fallthru
          _
        // Predicated region
        $region21: #{tpu_custom_call.1} parent=11 // pred_check
          %p308 = pneg %p114
        $region22: #{tpu_custom_call.1} parent=11 // pred_check_branch
          %310 = sbr.rel (%p308) target = $region24
        $region23: #{tpu_custom_call.1} parent=11 // pred_region
          %s312 = ssub.s32 6144, 6144
          %313 = vsyncadd [#allocation6], %s312
          %s314 = sshll.u32 [#allocation5], 4
          %s315 = int_to_ptr.vmem [resolvable:$true] %s314
          %320 = dma.hbm_to_vmem [thread:$0]  %s3, 6144, %s315, [#allocation6], 128, 128, 8
        $region24: #{tpu_custom_call.1} parent=11 // pred_fallthru
          _
        // Predicated region
        $region25: #{tpu_custom_call.1} parent=11 // pred_check
          %p321 = pneg %p135
        $region26: #{tpu_custom_call.1} parent=11 // pred_check_branch
          %323 = sbr.rel (%p321) target = $region28
        $region27: #{tpu_custom_call.1} parent=11 // pred_region
          _
        $region28: #{tpu_custom_call.1} parent=11 // pred_fallthru
          _
        // Predicated region
        $region29: #{tpu_custom_call.1} parent=11 // pred_check
          %p324 = pneg %p156
        $region30: #{tpu_custom_call.1} parent=11 // pred_check_branch
          %326 = sbr.rel (%p324) target = $region32
        $region31: #{tpu_custom_call.1} parent=11 // pred_region
          %s328 = ssub.s32 6144, 6144
          %329 = vsyncadd [#allocation6], %s328
          %s330 = sshll.u32 [#allocation7], 4
          %s331 = int_to_ptr.vmem [resolvable:$true] %s330
          %336 = dma.hbm_to_vmem [thread:$0]  %s5, 6144, %s331, [#allocation6], 128, 128, 8
        $region32: #{tpu_custom_call.1} parent=11 // pred_fallthru
          _
        // Predicated region
        $region33: #{tpu_custom_call.1} parent=11 // pred_check
          %p337 = pneg %p177
        $region34: #{tpu_custom_call.1} parent=11 // pred_check_branch
          %339 = sbr.rel (%p337) target = $region36
        $region35: #{tpu_custom_call.1} parent=11 // pred_region
          _
        $region36: #{tpu_custom_call.1} parent=11 // pred_fallthru
          _
        // Predicated region
        $region37: #{tpu_custom_call.1} parent=11 // pred_check
          %p340 = pneg %p198
        $region38: #{tpu_custom_call.1} parent=11 // pred_check_branch
          %342 = sbr.rel (%p340) target = $region40
        $region39: #{tpu_custom_call.1} parent=11 // pred_region
          %s344 = ssub.s32 6144, 6144
          %345 = vsyncadd [#allocation9], %s344
          %s346 = sshll.u32 [#allocation8], 4
          %s347 = int_to_ptr.vmem [resolvable:$true] %s346
          %352 = dma.hbm_to_vmem [thread:$0]  %s7, 6144, %s347, [#allocation9], 128, 128, 8
        $region40: #{tpu_custom_call.1} parent=11 // pred_fallthru
          _
        // Predicated region
        $region41: #{tpu_custom_call.1} parent=11 // pred_check
          %p353 = pneg %p219
        $region42: #{tpu_custom_call.1} parent=11 // pred_check_branch
          %355 = sbr.rel (%p353) target = $region44
        $region43: #{tpu_custom_call.1} parent=11 // pred_region
          _
        $region44: #{tpu_custom_call.1} parent=11 // pred_fallthru
          _
        // Predicated region
        $region45: #{tpu_custom_call.1} parent=11 // pred_check
          %p356 = pneg %p240
        $region46: #{tpu_custom_call.1} parent=11 // pred_check_branch
          %358 = sbr.rel (%p356) target = $region48
        $region47: #{tpu_custom_call.1} parent=11 // pred_region
          %s360 = ssub.s32 2048, 2048
          %361 = vsyncadd [#allocation9], %s360
          %s362 = sshll.u32 [#allocation10], 4
          %s363 = int_to_ptr.vmem [resolvable:$true] %s362
          %368 = dma.hbm_to_vmem [thread:$0]  %s9, 2048, %s363, [#allocation9], 128, 128, 8
        $region48: #{tpu_custom_call.1} parent=11 // pred_fallthru
          _
        // Predicated region
        $region49: #{tpu_custom_call.1} parent=11 // pred_check
          %p369 = pneg %p261
        $region50: #{tpu_custom_call.1} parent=11 // pred_check_branch
          %371 = sbr.rel (%p369) target = $region52
        $region51: #{tpu_custom_call.1} parent=11 // pred_region
          _
        $region52: #{tpu_custom_call.1} parent=11 // pred_fallthru
          _
      $region12: #{tpu_custom_call.1} parent=5 // pred_fallthru
        _
      %p372 = scmp.lt.s32.totalorder %s25, 2
      // Predicated region
      $region53: #{tpu_custom_call.1} parent=5 // pred_check
        %p373 = pneg %p372
      $region54: #{tpu_custom_call.1} parent=5 // pred_check_branch
        %375 = sbr.rel (%p373) target = $region56
      $region55: #{tpu_custom_call.1} parent=5 // pred_region
        // Predicated region
        $region57: #{tpu_custom_call.1} parent=55 // pred_check
          %p376 = pneg %p45
        $region58: #{tpu_custom_call.1} parent=55 // pred_check_branch
          %378 = sbr.rel (%p376) target = $region60
        $region59: #{tpu_custom_call.1} parent=55 // pred_region
          %s379 = sand.u32 %s35, 1
          %s380 = scalar_lea.sflag [#allocation3], %s379
          %s381 = sand.u32 %s35, 1
          %s382 = smul.addr %s381, 32
          %s383 = scalar_lea.vmem [#allocation2], %s382
          %s384 = smul.u32 2, %s25
          %s386 = ssub.s32 512, 512
          %387 = vsyncadd %s380, %s386
          %s388 = smul.addr %s384, 2
          %s389 = smul.addr %s388, 128
          %s390 = scalar_lea.hbm %s0, %s389
          %s391 = sshll.u32 %s383, 4
          %s392 = int_to_ptr.vmem [resolvable:$true] %s391
          %397 = dma.hbm_to_vmem [thread:$0]  %s390, 512, %s392, %s380, 128, 128, 8
        $region60: #{tpu_custom_call.1} parent=55 // pred_fallthru
          _
      $region56: #{tpu_custom_call.1} parent=5 // pred_fallthru
        _
      %p398 = scmp.le.s32.totalorder 1, %s25
      %p399 = scmp.lt.s32.totalorder %s25, 3
      %p400 = pnand %p398, %p399
      %p401 = pneg %p400
      // Predicated region
      $region61: #{tpu_custom_call.1} parent=5 // pred_check
        _
      $region62: #{tpu_custom_call.1} parent=5 // pred_check_branch
        %403 = sbr.rel (%p400) target = $region64
      $region63: #{tpu_custom_call.1} parent=5 // pred_region
        %s404 = ssub.s32 %s25, 1
        %s405 = sand.u32 %s38, 1
        %s406 = scalar_lea.sflag [#allocation3], %s405
        %s407 = sand.u32 %s38, 1
        %s408 = smul.addr %s407, 32
        %s409 = scalar_lea.vmem [#allocation2], %s408
        // Predicated region
        $region65: #{tpu_custom_call.1} parent=63 // pred_check
          %p410 = pneg %p51
        $region66: #{tpu_custom_call.1} parent=63 // pred_check_branch
          %412 = sbr.rel (%p410) target = $region68
        $region67: #{tpu_custom_call.1} parent=63 // pred_region
          %413 = dma.done %s406, 512
        $region68: #{tpu_custom_call.1} parent=63 // pred_fallthru
          _
        // Predicated region
        $region69: #{tpu_custom_call.1} parent=63 // pred_check
          %p414 = pneg %p114
        $region70: #{tpu_custom_call.1} parent=63 // pred_check_branch
          %416 = sbr.rel (%p414) target = $region72
        $region71: #{tpu_custom_call.1} parent=63 // pred_region
          %417 = dma.done [#allocation6], 6144
        $region72: #{tpu_custom_call.1} parent=63 // pred_fallthru
          _
        // Predicated region
        $region73: #{tpu_custom_call.1} parent=63 // pred_check
          %p418 = pneg %p156
        $region74: #{tpu_custom_call.1} parent=63 // pred_check_branch
          %420 = sbr.rel (%p418) target = $region76
        $region75: #{tpu_custom_call.1} parent=63 // pred_region
          %421 = dma.done [#allocation6], 6144
        $region76: #{tpu_custom_call.1} parent=63 // pred_fallthru
          _
        // Predicated region
        $region77: #{tpu_custom_call.1} parent=63 // pred_check
          %p422 = pneg %p198
        $region78: #{tpu_custom_call.1} parent=63 // pred_check_branch
          %424 = sbr.rel (%p422) target = $region80
        $region79: #{tpu_custom_call.1} parent=63 // pred_region
          %425 = dma.done [#allocation9], 6144
        $region80: #{tpu_custom_call.1} parent=63 // pred_fallthru
          _
        // Predicated region
        $region81: #{tpu_custom_call.1} parent=63 // pred_check
          %p426 = pneg %p240
        $region82: #{tpu_custom_call.1} parent=63 // pred_check_branch
          %428 = sbr.rel (%p426) target = $region84
        $region83: #{tpu_custom_call.1} parent=63 // pred_region
          %429 = dma.done [#allocation9], 2048
        $region84: #{tpu_custom_call.1} parent=63 // pred_fallthru
          _
        %s430 = sand.u32 %s38, 1
        %s431 = scalar_lea.sflag [#allocation3], %s430
        %s432 = sand.u32 %s38, 1
        %s433 = smul.addr %s432, 32
        %s434 = scalar_lea.vmem [#allocation2], %s433
        %p435 = pneg %p51
        %p436 = pneg %p48
        %p437 = pneg %p72
        %p438 = pneg %p69
        %p439 = pneg %p93
        %p440 = pneg %p90
        %p441 = pneg %p114
        %p442 = pneg %p111
        %p443 = pneg %p135
        %p444 = pneg %p132
        %p445 = pneg %p156
        %p446 = pneg %p153
        %p447 = pneg %p177
        %p448 = pneg %p174
        %p449 = pneg %p198
        %p450 = pneg %p195
        %p451 = pneg %p219
        %p452 = pneg %p216
        %p453 = pneg %p240
        %p454 = pneg %p237
        %p455 = pneg %p261
        %p456 = pneg %p258
        %p457 = pneg %p287
        %p458 = pneg %p284
        %s459 = sand.u32 %s274, 1
        %s460 = scalar_lea.sflag [#allocation4], %s459
        %s461 = sand.u32 %s274, 1
        %s462 = smul.addr %s461, 2
        %s463 = scalar_lea.vmem [#allocation11], %s462
        %s464 = smul.u32 2, %s30
        %s465 = smul.u32 2, %s30
        %v466 = vld [vmem:[%s409] sm:$0xff]
        %v467 = vld [vmem:[%s409 + $0x8] sm:$0xff]
        %v468 = vld [vmem:[%s409 + $0x10] sm:$0xff]
        %v469 = vld [vmem:[%s409 + $0x18] sm:$0xff]
        %v470 = vld [vmem:[%s1] sm:$0x1]
        %v472 = vlaneseq
        %v473 = vshrl.u32 %v472, 7
        %v474 = vsub.s32 0, %v473
        %v475 = vrot.slane %v470, %v474
        %v477 = vsub.f32 %v466, %v475
        %v478 = vsub.f32 %v467, %v475
        %v479 = vsub.f32 %v468, %v475
        %v480 = vsub.f32 %v469, %v475
        %v481 = vld [vmem:[%s2] sm:$0x1]
        %v483 = vlaneseq
        %v484 = vshrl.u32 %v483, 7
        %v485 = vsub.s32 0, %v484
        %v486 = vrot.slane %v481, %v485
        %v488 = vmul.f32 %v477, %v486
        %v489 = vmul.f32 %v478, %v486
        %v490 = vmul.f32 %v479, %v486
        %v491 = vmul.f32 %v480, %v486
        %vm494 = vcmask 1040384
        %v495 = vrot.slane %v488, 7
        %v496 = vrot.slane %v489, 7
        %v497 = vsel %vm494, %v495, %v496
        %v500 = vsel %vm494, 0.0, %v495
        %v503 = vrot.slane %v490, 7
        %v504 = vrot.slane %v491, 7
        %v505 = vsel %vm494, %v503, %v504
        %v508 = vsel %vm494, 0.0, %v503
        %v509 = vld [vmem:[#allocation5] sm:$0xff]
        %v510 = vld [vmem:[#allocation5 + $0x8] sm:$0xff]
        %v511 = vld [vmem:[#allocation5 + $0x10] sm:$0xff]
        %v512 = vld [vmem:[#allocation5 + $0x18] sm:$0xff]
        %v513 = vld [vmem:[#allocation5 + $0x20] sm:$0xff]
        %v514 = vld [vmem:[#allocation5 + $0x28] sm:$0xff]
        %v515 = vld [vmem:[#allocation5 + $0x30] sm:$0xff]
        %v516 = vld [vmem:[#allocation5 + $0x38] sm:$0xff]
        %v517 = vld [vmem:[#allocation5 + $0x40] sm:$0xff]
        %v518 = vld [vmem:[#allocation5 + $0x48] sm:$0xff]
        %v519 = vld [vmem:[#allocation5 + $0x50] sm:$0xff]
        %v520 = vld [vmem:[#allocation5 + $0x58] sm:$0xff]
        %v521 = vld [vmem:[#allocation5 + $0x60] sm:$0xff]
        %v522 = vld [vmem:[#allocation5 + $0x68] sm:$0xff]
        %v523 = vld [vmem:[#allocation5 + $0x70] sm:$0xff]
        %v524 = vld [vmem:[#allocation5 + $0x78] sm:$0xff]
        %s525 = scalar_lea.vmem [#allocation5], 128
        %v526 = vld [vmem:[%s525] sm:$0xff]
        %v527 = vld [vmem:[%s525 + $0x8] sm:$0xff]
        %v528 = vld [vmem:[%s525 + $0x10] sm:$0xff]
        %v529 = vld [vmem:[%s525 + $0x18] sm:$0xff]
        %v530 = vld [vmem:[%s525 + $0x20] sm:$0xff]
        %v531 = vld [vmem:[%s525 + $0x28] sm:$0xff]
        %v532 = vld [vmem:[%s525 + $0x30] sm:$0xff]
        %v533 = vld [vmem:[%s525 + $0x38] sm:$0xff]
        %v534 = vld [vmem:[%s525 + $0x40] sm:$0xff]
        %v535 = vld [vmem:[%s525 + $0x48] sm:$0xff]
        %v536 = vld [vmem:[%s525 + $0x50] sm:$0xff]
        %v537 = vld [vmem:[%s525 + $0x58] sm:$0xff]
        %v538 = vld [vmem:[%s525 + $0x60] sm:$0xff]
        %v539 = vld [vmem:[%s525 + $0x68] sm:$0xff]
        %v540 = vld [vmem:[%s525 + $0x70] sm:$0xff]
        %v541 = vld [vmem:[%s525 + $0x78] sm:$0xff]
        %542 = vmatprep.subr.mxu0 0.0
        %543 = vmatpush1.msra.mxu0 %v541
        %544 = vmatprep.subr.mxu0 0.0
        %545 = vmatpush1.msra.mxu0 %v540
        %546 = vmatprep.subr.mxu0 0.0
        %547 = vmatpush1.msra.mxu0 %v539
        %548 = vmatprep.subr.mxu0 0.0
        %549 = vmatpush1.msra.mxu0 %v538
        %550 = vmatprep.subr.mxu0 0.0
        %551 = vmatpush1.msra.mxu0 %v537
        %552 = vmatprep.subr.mxu0 0.0
        %553 = vmatpush1.msra.mxu0 %v536
        %554 = vmatprep.subr.mxu0 0.0
        %555 = vmatpush1.msra.mxu0 %v535
        %556 = vmatprep.subr.mxu0 0.0
        %557 = vmatpush1.msra.mxu0 %v534
        %558 = vmatprep.subr.mxu0 0.0
        %559 = vmatpush1.msra.mxu0 %v533
        %560 = vmatprep.subr.mxu0 0.0
        %561 = vmatpush1.msra.mxu0 %v532
        %562 = vmatprep.subr.mxu0 0.0
        %563 = vmatpush1.msra.mxu0 %v531
        %564 = vmatprep.subr.mxu0 0.0
        %565 = vmatpush1.msra.mxu0 %v530
        %566 = vmatprep.subr.mxu0 0.0
        %567 = vmatpush1.msra.mxu0 %v529
        %568 = vmatprep.subr.mxu0 0.0
        %569 = vmatpush1.msra.mxu0 %v528
        %570 = vmatprep.subr.mxu0 0.0
        %571 = vmatpush1.msra.mxu0 %v527
        %572 = vmatprep.subr.mxu0 0.0
        %573 = vmatpush1.msra.mxu0 %v526
        %574 = vmatprep.subr.mxu0 0.0
        %575 = vmatpush2.msra.mxu0 0.0
        %576 = vmatprep.subr.mxu0 0.0
        %577 = vmatpush2.msra.mxu0 0.0
        %578 = vmatprep.subr.mxu0 0.0
        %579 = vmatpush2.msra.mxu0 0.0
        %580 = vmatprep.subr.mxu0 0.0
        %581 = vmatpush2.msra.mxu0 0.0
        %582 = vmatprep.subr.mxu0 0.0
        %583 = vmatpush2.msra.mxu0 0.0
        %584 = vmatprep.subr.mxu0 0.0
        %585 = vmatpush2.msra.mxu0 0.0
        %586 = vmatprep.subr.mxu0 0.0
        %587 = vmatpush2.msra.mxu0 0.0
        %588 = vmatprep.subr.mxu0 0.0
        %589 = vmatpush2.msra.mxu0 0.0
        %590 = vmatprep.subr.mxu0 0.0
        %591 = vmatpush2.msra.mxu0 0.0
        %592 = vmatprep.subr.mxu0 0.0
        %593 = vmatpush2.msra.mxu0 0.0
        %594 = vmatprep.subr.mxu0 0.0
        %595 = vmatpush2.msra.mxu0 0.0
        %596 = vmatprep.subr.mxu0 0.0
        %597 = vmatpush2.msra.mxu0 0.0
        %598 = vmatprep.subr.mxu0 0.0
        %599 = vmatpush2.msra.mxu0 0.0
        %600 = vmatprep.subr.mxu0 0.0
        %601 = vmatpush2.msra.mxu0 0.0
        %602 = vmatprep.subr.mxu0 0.0
        %603 = vmatpush2.msra.mxu0 0.0
        %604 = vmatprep.subr.mxu0 0.0
        %605 = vmatpush2.msra.mxu0 0.0
        %606 = vmatprep.mubr.f32.mxu0 0.0
        %607 = vmatmul.mubr.f32.gmra.mxu0 %v488
        %v608 = vpop.f32.mrf.mxu0
        %v609 = vadd.f32 0.0, %v608
        %v610 = vpop.f32.mrf.mxu0
        %611 = vmatprep.mubr.f32.mxu0 0.0
        %612 = vmatmul.mubr.f32.gmra.mxu0 %v489
        %v613 = vpop.f32.mrf.mxu0
        %v614 = vadd.f32 0.0, %v613
        %v615 = vpop.f32.mrf.mxu0
        %616 = vmatprep.mubr.f32.mxu0 0.0
        %617 = vmatmul.mubr.f32.gmra.mxu0 %v490
        %v618 = vpop.f32.mrf.mxu0
        %v619 = vadd.f32 0.0, %v618
        %v620 = vpop.f32.mrf.mxu0
        %621 = vmatprep.mubr.f32.mxu0 0.0
        %622 = vmatmul.mubr.f32.gmra.mxu0 %v491
        %v623 = vpop.f32.mrf.mxu0
        %v624 = vadd.f32 0.0, %v623
        %v625 = vpop.f32.mrf.mxu0
        %626 = vdwg.mxu0
        %627 = vmatprep.subr.mxu0 0.0
        %628 = vmatpush1.msra.mxu0 %v524
        %629 = vmatprep.subr.mxu0 0.0
        %630 = vmatpush1.msra.mxu0 %v523
        %631 = vmatprep.subr.mxu0 0.0
        %632 = vmatpush1.msra.mxu0 %v522
        %633 = vmatprep.subr.mxu0 0.0
        %634 = vmatpush1.msra.mxu0 %v521
        %635 = vmatprep.subr.mxu0 0.0
        %636 = vmatpush1.msra.mxu0 %v520
        %637 = vmatprep.subr.mxu0 0.0
        %638 = vmatpush1.msra.mxu0 %v519
        %639 = vmatprep.subr.mxu0 0.0
        %640 = vmatpush1.msra.mxu0 %v518
        %641 = vmatprep.subr.mxu0 0.0
        %642 = vmatpush1.msra.mxu0 %v517
        %643 = vmatprep.subr.mxu0 0.0
        %644 = vmatpush1.msra.mxu0 %v516
        %645 = vmatprep.subr.mxu0 0.0
        %646 = vmatpush1.msra.mxu0 %v515
        %647 = vmatprep.subr.mxu0 0.0
        %648 = vmatpush1.msra.mxu0 %v514
        %649 = vmatprep.subr.mxu0 0.0
        %650 = vmatpush1.msra.mxu0 %v513
        %651 = vmatprep.subr.mxu0 0.0
        %652 = vmatpush1.msra.mxu0 %v512
        %653 = vmatprep.subr.mxu0 0.0
        %654 = vmatpush1.msra.mxu0 %v511
        %655 = vmatprep.subr.mxu0 0.0
        %656 = vmatpush1.msra.mxu0 %v510
        %657 = vmatprep.subr.mxu0 0.0
        %658 = vmatpush1.msra.mxu0 %v509
        %659 = vmatprep.subr.mxu0 0.0
        %660 = vmatpush2.msra.mxu0 0.0
        %661 = vmatprep.subr.mxu0 0.0
        %662 = vmatpush2.msra.mxu0 0.0
        %663 = vmatprep.subr.mxu0 0.0
        %664 = vmatpush2.msra.mxu0 0.0
        %665 = vmatprep.subr.mxu0 0.0
        %666 = vmatpush2.msra.mxu0 0.0
        %667 = vmatprep.subr.mxu0 0.0
        %668 = vmatpush2.msra.mxu0 0.0
        %669 = vmatprep.subr.mxu0 0.0
        %670 = vmatpush2.msra.mxu0 0.0
        %671 = vmatprep.subr.mxu0 0.0
        %672 = vmatpush2.msra.mxu0 0.0
        %673 = vmatprep.subr.mxu0 0.0
        %674 = vmatpush2.msra.mxu0 0.0
        %675 = vmatprep.subr.mxu0 0.0
        %676 = vmatpush2.msra.mxu0 0.0
        %677 = vmatprep.subr.mxu0 0.0
        %678 = vmatpush2.msra.mxu0 0.0
        %679 = vmatprep.subr.mxu0 0.0
        %680 = vmatpush2.msra.mxu0 0.0
        %681 = vmatprep.subr.mxu0 0.0
        %682 = vmatpush2.msra.mxu0 0.0
        %683 = vmatprep.subr.mxu0 0.0
        %684 = vmatpush2.msra.mxu0 0.0
        %685 = vmatprep.subr.mxu0 0.0
        %686 = vmatpush2.msra.mxu0 0.0
        %687 = vmatprep.subr.mxu0 0.0
        %688 = vmatpush2.msra.mxu0 0.0
        %689 = vmatprep.subr.mxu0 0.0
        %690 = vmatpush2.msra.mxu0 0.0
        %691 = vmatprep.mubr.f32.mxu0 0.0
        %692 = vmatmul.mubr.f32.gmra.mxu0 %v500
        %v693 = vpop.f32.mrf.mxu0
        %v694 = vadd.f32 %v609, %v693
        %v695 = vpop.f32.mrf.mxu0
        %696 = vmatprep.mubr.f32.mxu0 0.0
        %697 = vmatmul.mubr.f32.gmra.mxu0 %v497
        %v698 = vpop.f32.mrf.mxu0
        %v699 = vadd.f32 %v614, %v698
        %v700 = vpop.f32.mrf.mxu0
        %701 = vmatprep.mubr.f32.mxu0 0.0
        %702 = vmatmul.mubr.f32.gmra.mxu0 %v508
        %v703 = vpop.f32.mrf.mxu0
        %v704 = vadd.f32 %v619, %v703
        %v705 = vpop.f32.mrf.mxu0
        %706 = vmatprep.mubr.f32.mxu0 0.0
        %707 = vmatmul.mubr.f32.gmra.mxu0 %v505
        %v708 = vpop.f32.mrf.mxu0
        %v709 = vadd.f32 %v624, %v708
        %v710 = vpop.f32.mrf.mxu0
        %711 = vdwg.mxu0
        %vm712 = vcmask 1046528
        %v713 = vrot.slane %v488, 1
        %v714 = vrot.slane %v489, 1
        %v715 = vsel %vm712, %v713, %v714
        %v718 = vsel %vm712, %v714, 0.0
        %v719 = vrot.slane %v490, 1
        %v720 = vrot.slane %v491, 1
        %v721 = vsel %vm712, %v719, %v720
        %v724 = vsel %vm712, %v720, 0.0
        %s725 = scalar_lea.vmem [#allocation5], 256
        %v726 = vld [vmem:[%s725] sm:$0xff]
        %v727 = vld [vmem:[%s725 + $0x8] sm:$0xff]
        %v728 = vld [vmem:[%s725 + $0x10] sm:$0xff]
        %v729 = vld [vmem:[%s725 + $0x18] sm:$0xff]
        %v730 = vld [vmem:[%s725 + $0x20] sm:$0xff]
        %v731 = vld [vmem:[%s725 + $0x28] sm:$0xff]
        %v732 = vld [vmem:[%s725 + $0x30] sm:$0xff]
        %v733 = vld [vmem:[%s725 + $0x38] sm:$0xff]
        %v734 = vld [vmem:[%s725 + $0x40] sm:$0xff]
        %v735 = vld [vmem:[%s725 + $0x48] sm:$0xff]
        %v736 = vld [vmem:[%s725 + $0x50] sm:$0xff]
        %v737 = vld [vmem:[%s725 + $0x58] sm:$0xff]
        %v738 = vld [vmem:[%s725 + $0x60] sm:$0xff]
        %v739 = vld [vmem:[%s725 + $0x68] sm:$0xff]
        %v740 = vld [vmem:[%s725 + $0x70] sm:$0xff]
        %v741 = vld [vmem:[%s725 + $0x78] sm:$0xff]
        %742 = vmatprep.subr.mxu0 0.0
        %743 = vmatpush1.msra.mxu0 %v741
        %744 = vmatprep.subr.mxu0 0.0
        %745 = vmatpush1.msra.mxu0 %v740
        %746 = vmatprep.subr.mxu0 0.0
        %747 = vmatpush1.msra.mxu0 %v739
        %748 = vmatprep.subr.mxu0 0.0
        %749 = vmatpush1.msra.mxu0 %v738
        %750 = vmatprep.subr.mxu0 0.0
        %751 = vmatpush1.msra.mxu0 %v737
        %752 = vmatprep.subr.mxu0 0.0
        %753 = vmatpush1.msra.mxu0 %v736
        %754 = vmatprep.subr.mxu0 0.0
        %755 = vmatpush1.msra.mxu0 %v735
        %756 = vmatprep.subr.mxu0 0.0
        %757 = vmatpush1.msra.mxu0 %v734
        %758 = vmatprep.subr.mxu0 0.0
        %759 = vmatpush1.msra.mxu0 %v733
        %760 = vmatprep.subr.mxu0 0.0
        %761 = vmatpush1.msra.mxu0 %v732
        %762 = vmatprep.subr.mxu0 0.0
        %763 = vmatpush1.msra.mxu0 %v731
        %764 = vmatprep.subr.mxu0 0.0
        %765 = vmatpush1.msra.mxu0 %v730
        %766 = vmatprep.subr.mxu0 0.0
        %767 = vmatpush1.msra.mxu0 %v729
        %768 = vmatprep.subr.mxu0 0.0
        %769 = vmatpush1.msra.mxu0 %v728
        %770 = vmatprep.subr.mxu0 0.0
        %771 = vmatpush1.msra.mxu0 %v727
        %772 = vmatprep.subr.mxu0 0.0
        %773 = vmatpush1.msra.mxu0 %v726
        %774 = vmatprep.subr.mxu0 0.0
        %775 = vmatpush2.msra.mxu0 0.0
        %776 = vmatprep.subr.mxu0 0.0
        %777 = vmatpush2.msra.mxu0 0.0
        %778 = vmatprep.subr.mxu0 0.0
        %779 = vmatpush2.msra.mxu0 0.0
        %780 = vmatprep.subr.mxu0 0.0
        %781 = vmatpush2.msra.mxu0 0.0
        %782 = vmatprep.subr.mxu0 0.0
        %783 = vmatpush2.msra.mxu0 0.0
        %784 = vmatprep.subr.mxu0 0.0
        %785 = vmatpush2.msra.mxu0 0.0
        %786 = vmatprep.subr.mxu0 0.0
        %787 = vmatpush2.msra.mxu0 0.0
        %788 = vmatprep.subr.mxu0 0.0
        %789 = vmatpush2.msra.mxu0 0.0
        %790 = vmatprep.subr.mxu0 0.0
        %791 = vmatpush2.msra.mxu0 0.0
        %792 = vmatprep.subr.mxu0 0.0
        %793 = vmatpush2.msra.mxu0 0.0
        %794 = vmatprep.subr.mxu0 0.0
        %795 = vmatpush2.msra.mxu0 0.0
        %796 = vmatprep.subr.mxu0 0.0
        %797 = vmatpush2.msra.mxu0 0.0
        %798 = vmatprep.subr.mxu0 0.0
        %799 = vmatpush2.msra.mxu0 0.0
        %800 = vmatprep.subr.mxu0 0.0
        %801 = vmatpush2.msra.mxu0 0.0
        %802 = vmatprep.subr.mxu0 0.0
        %803 = vmatpush2.msra.mxu0 0.0
        %804 = vmatprep.subr.mxu0 0.0
        %805 = vmatpush2.msra.mxu0 0.0
        %806 = vmatprep.mubr.f32.mxu0 0.0
        %807 = vmatmul.mubr.f32.gmra.mxu0 %v715
        %v808 = vpop.f32.mrf.mxu0
        %v809 = vadd.f32 0.0, %v808
        %v810 = vpop.f32.mrf.mxu0
        %811 = vmatprep.mubr.f32.mxu0 0.0
        %812 = vmatmul.mubr.f32.gmra.mxu0 %v718
        %v813 = vpop.f32.mrf.mxu0
        %v814 = vadd.f32 0.0, %v813
        %v815 = vpop.f32.mrf.mxu0
        %816 = vmatprep.mubr.f32.mxu0 0.0
        %817 = vmatmul.mubr.f32.gmra.mxu0 %v721
        %v818 = vpop.f32.mrf.mxu0
        %v819 = vadd.f32 0.0, %v818
        %v820 = vpop.f32.mrf.mxu0
        %821 = vmatprep.mubr.f32.mxu0 0.0
        %822 = vmatmul.mubr.f32.gmra.mxu0 %v724
        %v823 = vpop.f32.mrf.mxu0
        %v824 = vadd.f32 0.0, %v823
        %v825 = vpop.f32.mrf.mxu0
        %826 = vdwg.mxu0
        %v827 = vadd.f32 %v694, %v809
        %v828 = vadd.f32 %v699, %v814
        %v829 = vadd.f32 %v704, %v819
        %v830 = vadd.f32 %v709, %v824
        %v831 = vld [vmem:[%s4] sm:$0x1]
        %v833 = vlaneseq
        %v834 = vshrl.u32 %v833, 7
        %v835 = vsub.s32 0, %v834
        %v836 = vrot.slane %v831, %v835
        %v838 = vadd.f32 %v827, %v836
        %v839 = vadd.f32 %v828, %v836
        %v840 = vadd.f32 %v829, %v836
        %v841 = vadd.f32 %v830, %v836
        %v842 = vmax.f32 %v838, 0.0
        %v843 = vmax.f32 %v839, 0.0
        %v844 = vmax.f32 %v840, 0.0
        %v845 = vmax.f32 %v841, 0.0
        %v848 = vrot.slane %v842, 7
        %v849 = vrot.slane %v843, 7
        %v850 = vsel %vm494, %v848, %v849
        %v853 = vsel %vm494, 0.0, %v848
        %v856 = vrot.slane %v844, 7
        %v857 = vrot.slane %v845, 7
        %v858 = vsel %vm494, %v856, %v857
        %v861 = vsel %vm494, 0.0, %v856
        %v862 = vld [vmem:[#allocation7] sm:$0xff]
        %v863 = vld [vmem:[#allocation7 + $0x8] sm:$0xff]
        %v864 = vld [vmem:[#allocation7 + $0x10] sm:$0xff]
        %v865 = vld [vmem:[#allocation7 + $0x18] sm:$0xff]
        %v866 = vld [vmem:[#allocation7 + $0x20] sm:$0xff]
        %v867 = vld [vmem:[#allocation7 + $0x28] sm:$0xff]
        %v868 = vld [vmem:[#allocation7 + $0x30] sm:$0xff]
        %v869 = vld [vmem:[#allocation7 + $0x38] sm:$0xff]
        %v870 = vld [vmem:[#allocation7 + $0x40] sm:$0xff]
        %v871 = vld [vmem:[#allocation7 + $0x48] sm:$0xff]
        %v872 = vld [vmem:[#allocation7 + $0x50] sm:$0xff]
        %v873 = vld [vmem:[#allocation7 + $0x58] sm:$0xff]
        %v874 = vld [vmem:[#allocation7 + $0x60] sm:$0xff]
        %v875 = vld [vmem:[#allocation7 + $0x68] sm:$0xff]
        %v876 = vld [vmem:[#allocation7 + $0x70] sm:$0xff]
        %v877 = vld [vmem:[#allocation7 + $0x78] sm:$0xff]
        %s878 = scalar_lea.vmem [#allocation7], 128
        %v879 = vld [vmem:[%s878] sm:$0xff]
        %v880 = vld [vmem:[%s878 + $0x8] sm:$0xff]
        %v881 = vld [vmem:[%s878 + $0x10] sm:$0xff]
        %v882 = vld [vmem:[%s878 + $0x18] sm:$0xff]
        %v883 = vld [vmem:[%s878 + $0x20] sm:$0xff]
        %v884 = vld [vmem:[%s878 + $0x28] sm:$0xff]
        %v885 = vld [vmem:[%s878 + $0x30] sm:$0xff]
        %v886 = vld [vmem:[%s878 + $0x38] sm:$0xff]
        %v887 = vld [vmem:[%s878 + $0x40] sm:$0xff]
        %v888 = vld [vmem:[%s878 + $0x48] sm:$0xff]
        %v889 = vld [vmem:[%s878 + $0x50] sm:$0xff]
        %v890 = vld [vmem:[%s878 + $0x58] sm:$0xff]
        %v891 = vld [vmem:[%s878 + $0x60] sm:$0xff]
        %v892 = vld [vmem:[%s878 + $0x68] sm:$0xff]
        %v893 = vld [vmem:[%s878 + $0x70] sm:$0xff]
        %v894 = vld [vmem:[%s878 + $0x78] sm:$0xff]
        %895 = vmatprep.subr.mxu0 0.0
        %896 = vmatpush1.msra.mxu0 %v894
        %897 = vmatprep.subr.mxu0 0.0
        %898 = vmatpush1.msra.mxu0 %v893
        %899 = vmatprep.subr.mxu0 0.0
        %900 = vmatpush1.msra.mxu0 %v892
        %901 = vmatprep.subr.mxu0 0.0
        %902 = vmatpush1.msra.mxu0 %v891
        %903 = vmatprep.subr.mxu0 0.0
        %904 = vmatpush1.msra.mxu0 %v890
        %905 = vmatprep.subr.mxu0 0.0
        %906 = vmatpush1.msra.mxu0 %v889
        %907 = vmatprep.subr.mxu0 0.0
        %908 = vmatpush1.msra.mxu0 %v888
        %909 = vmatprep.subr.mxu0 0.0
        %910 = vmatpush1.msra.mxu0 %v887
        %911 = vmatprep.subr.mxu0 0.0
        %912 = vmatpush1.msra.mxu0 %v886
        %913 = vmatprep.subr.mxu0 0.0
        %914 = vmatpush1.msra.mxu0 %v885
        %915 = vmatprep.subr.mxu0 0.0
        %916 = vmatpush1.msra.mxu0 %v884
        %917 = vmatprep.subr.mxu0 0.0
        %918 = vmatpush1.msra.mxu0 %v883
        %919 = vmatprep.subr.mxu0 0.0
        %920 = vmatpush1.msra.mxu0 %v882
        %921 = vmatprep.subr.mxu0 0.0
        %922 = vmatpush1.msra.mxu0 %v881
        %923 = vmatprep.subr.mxu0 0.0
        %924 = vmatpush1.msra.mxu0 %v880
        %925 = vmatprep.subr.mxu0 0.0
        %926 = vmatpush1.msra.mxu0 %v879
        %927 = vmatprep.subr.mxu0 0.0
        %928 = vmatpush2.msra.mxu0 0.0
        %929 = vmatprep.subr.mxu0 0.0
        %930 = vmatpush2.msra.mxu0 0.0
        %931 = vmatprep.subr.mxu0 0.0
        %932 = vmatpush2.msra.mxu0 0.0
        %933 = vmatprep.subr.mxu0 0.0
        %934 = vmatpush2.msra.mxu0 0.0
        %935 = vmatprep.subr.mxu0 0.0
        %936 = vmatpush2.msra.mxu0 0.0
        %937 = vmatprep.subr.mxu0 0.0
        %938 = vmatpush2.msra.mxu0 0.0
        %939 = vmatprep.subr.mxu0 0.0
        %940 = vmatpush2.msra.mxu0 0.0
        %941 = vmatprep.subr.mxu0 0.0
        %942 = vmatpush2.msra.mxu0 0.0
        %943 = vmatprep.subr.mxu0 0.0
        %944 = vmatpush2.msra.mxu0 0.0
        %945 = vmatprep.subr.mxu0 0.0
        %946 = vmatpush2.msra.mxu0 0.0
        %947 = vmatprep.subr.mxu0 0.0
        %948 = vmatpush2.msra.mxu0 0.0
        %949 = vmatprep.subr.mxu0 0.0
        %950 = vmatpush2.msra.mxu0 0.0
        %951 = vmatprep.subr.mxu0 0.0
        %952 = vmatpush2.msra.mxu0 0.0
        %953 = vmatprep.subr.mxu0 0.0
        %954 = vmatpush2.msra.mxu0 0.0
        %955 = vmatprep.subr.mxu0 0.0
        %956 = vmatpush2.msra.mxu0 0.0
        %957 = vmatprep.subr.mxu0 0.0
        %958 = vmatpush2.msra.mxu0 0.0
        %959 = vmatprep.mubr.f32.mxu0 0.0
        %960 = vmatmul.mubr.f32.gmra.mxu0 %v842
        %v961 = vpop.f32.mrf.mxu0
        %v962 = vadd.f32 0.0, %v961
        %v963 = vpop.f32.mrf.mxu0
        %964 = vmatprep.mubr.f32.mxu0 0.0
        %965 = vmatmul.mubr.f32.gmra.mxu0 %v843
        %v966 = vpop.f32.mrf.mxu0
        %v967 = vadd.f32 0.0, %v966
        %v968 = vpop.f32.mrf.mxu0
        %969 = vmatprep.mubr.f32.mxu0 0.0
        %970 = vmatmul.mubr.f32.gmra.mxu0 %v844
        %v971 = vpop.f32.mrf.mxu0
        %v972 = vadd.f32 0.0, %v971
        %v973 = vpop.f32.mrf.mxu0
        %974 = vmatprep.mubr.f32.mxu0 0.0
        %975 = vmatmul.mubr.f32.gmra.mxu0 %v845
        %v976 = vpop.f32.mrf.mxu0
        %v977 = vadd.f32 0.0, %v976
        %v978 = vpop.f32.mrf.mxu0
        %979 = vdwg.mxu0
        %980 = vmatprep.subr.mxu0 0.0
        %981 = vmatpush1.msra.mxu0 %v877
        %982 = vmatprep.subr.mxu0 0.0
        %983 = vmatpush1.msra.mxu0 %v876
        %984 = vmatprep.subr.mxu0 0.0
        %985 = vmatpush1.msra.mxu0 %v875
        %986 = vmatprep.subr.mxu0 0.0
        %987 = vmatpush1.msra.mxu0 %v874
        %988 = vmatprep.subr.mxu0 0.0
        %989 = vmatpush1.msra.mxu0 %v873
        %990 = vmatprep.subr.mxu0 0.0
        %991 = vmatpush1.msra.mxu0 %v872
        %992 = vmatprep.subr.mxu0 0.0
        %993 = vmatpush1.msra.mxu0 %v871
        %994 = vmatprep.subr.mxu0 0.0
        %995 = vmatpush1.msra.mxu0 %v870
        %996 = vmatprep.subr.mxu0 0.0
        %997 = vmatpush1.msra.mxu0 %v869
        %998 = vmatprep.subr.mxu0 0.0
        %999 = vmatpush1.msra.mxu0 %v868
        %1000 = vmatprep.subr.mxu0 0.0
        %1001 = vmatpush1.msra.mxu0 %v867
        %1002 = vmatprep.subr.mxu0 0.0
        %1003 = vmatpush1.msra.mxu0 %v866
        %1004 = vmatprep.subr.mxu0 0.0
        %1005 = vmatpush1.msra.mxu0 %v865
        %1006 = vmatprep.subr.mxu0 0.0
        %1007 = vmatpush1.msra.mxu0 %v864
        %1008 = vmatprep.subr.mxu0 0.0
        %1009 = vmatpush1.msra.mxu0 %v863
        %1010 = vmatprep.subr.mxu0 0.0
        %1011 = vmatpush1.msra.mxu0 %v862
        %1012 = vmatprep.subr.mxu0 0.0
        %1013 = vmatpush2.msra.mxu0 0.0
        %1014 = vmatprep.subr.mxu0 0.0
        %1015 = vmatpush2.msra.mxu0 0.0
        %1016 = vmatprep.subr.mxu0 0.0
        %1017 = vmatpush2.msra.mxu0 0.0
        %1018 = vmatprep.subr.mxu0 0.0
        %1019 = vmatpush2.msra.mxu0 0.0
        %1020 = vmatprep.subr.mxu0 0.0
        %1021 = vmatpush2.msra.mxu0 0.0
        %1022 = vmatprep.subr.mxu0 0.0
        %1023 = vmatpush2.msra.mxu0 0.0
        %1024 = vmatprep.subr.mxu0 0.0
        %1025 = vmatpush2.msra.mxu0 0.0
        %1026 = vmatprep.subr.mxu0 0.0
        %1027 = vmatpush2.msra.mxu0 0.0
        %1028 = vmatprep.subr.mxu0 0.0
        %1029 = vmatpush2.msra.mxu0 0.0
        %1030 = vmatprep.subr.mxu0 0.0
        %1031 = vmatpush2.msra.mxu0 0.0
        %1032 = vmatprep.subr.mxu0 0.0
        %1033 = vmatpush2.msra.mxu0 0.0
        %1034 = vmatprep.subr.mxu0 0.0
        %1035 = vmatpush2.msra.mxu0 0.0
        %1036 = vmatprep.subr.mxu0 0.0
        %1037 = vmatpush2.msra.mxu0 0.0
        %1038 = vmatprep.subr.mxu0 0.0
        %1039 = vmatpush2.msra.mxu0 0.0
        %1040 = vmatprep.subr.mxu0 0.0
        %1041 = vmatpush2.msra.mxu0 0.0
        %1042 = vmatprep.subr.mxu0 0.0
        %1043 = vmatpush2.msra.mxu0 0.0
        %1044 = vmatprep.mubr.f32.mxu0 0.0
        %1045 = vmatmul.mubr.f32.gmra.mxu0 %v853
        %v1046 = vpop.f32.mrf.mxu0
        %v1047 = vadd.f32 %v962, %v1046
        %v1048 = vpop.f32.mrf.mxu0
        %1049 = vmatprep.mubr.f32.mxu0 0.0
        %1050 = vmatmul.mubr.f32.gmra.mxu0 %v850
        %v1051 = vpop.f32.mrf.mxu0
        %v1052 = vadd.f32 %v967, %v1051
        %v1053 = vpop.f32.mrf.mxu0
        %1054 = vmatprep.mubr.f32.mxu0 0.0
        %1055 = vmatmul.mubr.f32.gmra.mxu0 %v861
        %v1056 = vpop.f32.mrf.mxu0
        %v1057 = vadd.f32 %v972, %v1056
        %v1058 = vpop.f32.mrf.mxu0
        %1059 = vmatprep.mubr.f32.mxu0 0.0
        %1060 = vmatmul.mubr.f32.gmra.mxu0 %v858
        %v1061 = vpop.f32.mrf.mxu0
        %v1062 = vadd.f32 %v977, %v1061
        %v1063 = vpop.f32.mrf.mxu0
        %1064 = vdwg.mxu0
        %v1065 = vrot.slane %v842, 1
        %v1066 = vrot.slane %v843, 1
        %v1067 = vsel %vm712, %v1065, %v1066
        %v1070 = vsel %vm712, %v1066, 0.0
        %v1071 = vrot.slane %v844, 1
        %v1072 = vrot.slane %v845, 1
        %v1073 = vsel %vm712, %v1071, %v1072
        %v1076 = vsel %vm712, %v1072, 0.0
        %s1077 = scalar_lea.vmem [#allocation7], 256
        %v1078 = vld [vmem:[%s1077] sm:$0xff]
        %v1079 = vld [vmem:[%s1077 + $0x8] sm:$0xff]
        %v1080 = vld [vmem:[%s1077 + $0x10] sm:$0xff]
        %v1081 = vld [vmem:[%s1077 + $0x18] sm:$0xff]
        %v1082 = vld [vmem:[%s1077 + $0x20] sm:$0xff]
        %v1083 = vld [vmem:[%s1077 + $0x28] sm:$0xff]
        %v1084 = vld [vmem:[%s1077 + $0x30] sm:$0xff]
        %v1085 = vld [vmem:[%s1077 + $0x38] sm:$0xff]
        %v1086 = vld [vmem:[%s1077 + $0x40] sm:$0xff]
        %v1087 = vld [vmem:[%s1077 + $0x48] sm:$0xff]
        %v1088 = vld [vmem:[%s1077 + $0x50] sm:$0xff]
        %v1089 = vld [vmem:[%s1077 + $0x58] sm:$0xff]
        %v1090 = vld [vmem:[%s1077 + $0x60] sm:$0xff]
        %v1091 = vld [vmem:[%s1077 + $0x68] sm:$0xff]
        %v1092 = vld [vmem:[%s1077 + $0x70] sm:$0xff]
        %v1093 = vld [vmem:[%s1077 + $0x78] sm:$0xff]
        %1094 = vmatprep.subr.mxu0 0.0
        %1095 = vmatpush1.msra.mxu0 %v1093
        %1096 = vmatprep.subr.mxu0 0.0
        %1097 = vmatpush1.msra.mxu0 %v1092
        %1098 = vmatprep.subr.mxu0 0.0
        %1099 = vmatpush1.msra.mxu0 %v1091
        %1100 = vmatprep.subr.mxu0 0.0
        %1101 = vmatpush1.msra.mxu0 %v1090
        %1102 = vmatprep.subr.mxu0 0.0
        %1103 = vmatpush1.msra.mxu0 %v1089
        %1104 = vmatprep.subr.mxu0 0.0
        %1105 = vmatpush1.msra.mxu0 %v1088
        %1106 = vmatprep.subr.mxu0 0.0
        %1107 = vmatpush1.msra.mxu0 %v1087
        %1108 = vmatprep.subr.mxu0 0.0
        %1109 = vmatpush1.msra.mxu0 %v1086
        %1110 = vmatprep.subr.mxu0 0.0
        %1111 = vmatpush1.msra.mxu0 %v1085
        %1112 = vmatprep.subr.mxu0 0.0
        %1113 = vmatpush1.msra.mxu0 %v1084
        %1114 = vmatprep.subr.mxu0 0.0
        %1115 = vmatpush1.msra.mxu0 %v1083
        %1116 = vmatprep.subr.mxu0 0.0
        %1117 = vmatpush1.msra.mxu0 %v1082
        %1118 = vmatprep.subr.mxu0 0.0
        %1119 = vmatpush1.msra.mxu0 %v1081
        %1120 = vmatprep.subr.mxu0 0.0
        %1121 = vmatpush1.msra.mxu0 %v1080
        %1122 = vmatprep.subr.mxu0 0.0
        %1123 = vmatpush1.msra.mxu0 %v1079
        %1124 = vmatprep.subr.mxu0 0.0
        %1125 = vmatpush1.msra.mxu0 %v1078
        %1126 = vmatprep.subr.mxu0 0.0
        %1127 = vmatpush2.msra.mxu0 0.0
        %1128 = vmatprep.subr.mxu0 0.0
        %1129 = vmatpush2.msra.mxu0 0.0
        %1130 = vmatprep.subr.mxu0 0.0
        %1131 = vmatpush2.msra.mxu0 0.0
        %1132 = vmatprep.subr.mxu0 0.0
        %1133 = vmatpush2.msra.mxu0 0.0
        %1134 = vmatprep.subr.mxu0 0.0
        %1135 = vmatpush2.msra.mxu0 0.0
        %1136 = vmatprep.subr.mxu0 0.0
        %1137 = vmatpush2.msra.mxu0 0.0
        %1138 = vmatprep.subr.mxu0 0.0
        %1139 = vmatpush2.msra.mxu0 0.0
        %1140 = vmatprep.subr.mxu0 0.0
        %1141 = vmatpush2.msra.mxu0 0.0
        %1142 = vmatprep.subr.mxu0 0.0
        %1143 = vmatpush2.msra.mxu0 0.0
        %1144 = vmatprep.subr.mxu0 0.0
        %1145 = vmatpush2.msra.mxu0 0.0
        %1146 = vmatprep.subr.mxu0 0.0
        %1147 = vmatpush2.msra.mxu0 0.0
        %1148 = vmatprep.subr.mxu0 0.0
        %1149 = vmatpush2.msra.mxu0 0.0
        %1150 = vmatprep.subr.mxu0 0.0
        %1151 = vmatpush2.msra.mxu0 0.0
        %1152 = vmatprep.subr.mxu0 0.0
        %1153 = vmatpush2.msra.mxu0 0.0
        %1154 = vmatprep.subr.mxu0 0.0
        %1155 = vmatpush2.msra.mxu0 0.0
        %1156 = vmatprep.subr.mxu0 0.0
        %1157 = vmatpush2.msra.mxu0 0.0
        %1158 = vmatprep.mubr.f32.mxu0 0.0
        %1159 = vmatmul.mubr.f32.gmra.mxu0 %v1067
        %v1160 = vpop.f32.mrf.mxu0
        %v1161 = vadd.f32 0.0, %v1160
        %v1162 = vpop.f32.mrf.mxu0
        %1163 = vmatprep.mubr.f32.mxu0 0.0
        %1164 = vmatmul.mubr.f32.gmra.mxu0 %v1070
        %v1165 = vpop.f32.mrf.mxu0
        %v1166 = vadd.f32 0.0, %v1165
        %v1167 = vpop.f32.mrf.mxu0
        %1168 = vmatprep.mubr.f32.mxu0 0.0
        %1169 = vmatmul.mubr.f32.gmra.mxu0 %v1073
        %v1170 = vpop.f32.mrf.mxu0
        %v1171 = vadd.f32 0.0, %v1170
        %v1172 = vpop.f32.mrf.mxu0
        %1173 = vmatprep.mubr.f32.mxu0 0.0
        %1174 = vmatmul.mubr.f32.gmra.mxu0 %v1076
        %v1175 = vpop.f32.mrf.mxu0
        %v1176 = vadd.f32 0.0, %v1175
        %v1177 = vpop.f32.mrf.mxu0
        %1178 = vdwg.mxu0
        %v1179 = vadd.f32 %v1047, %v1161
        %v1180 = vadd.f32 %v1052, %v1166
        %v1181 = vadd.f32 %v1057, %v1171
        %v1182 = vadd.f32 %v1062, %v1176
        %v1183 = vld [vmem:[%s6] sm:$0x1]
        %v1185 = vlaneseq
        %v1186 = vshrl.u32 %v1185, 7
        %v1187 = vsub.s32 0, %v1186
        %v1188 = vrot.slane %v1183, %v1187
        %v1190 = vadd.f32 %v1179, %v1188
        %v1191 = vadd.f32 %v1180, %v1188
        %v1192 = vadd.f32 %v1181, %v1188
        %v1193 = vadd.f32 %v1182, %v1188
        %v1194 = vmax.f32 %v1190, 0.0
        %v1195 = vmax.f32 %v1191, 0.0
        %v1196 = vmax.f32 %v1192, 0.0
        %v1197 = vmax.f32 %v1193, 0.0
        %v1200 = vrot.slane %v1194, 7
        %v1201 = vrot.slane %v1195, 7
        %v1202 = vsel %vm494, %v1200, %v1201
        %v1205 = vsel %vm494, 0.0, %v1200
        %v1208 = vrot.slane %v1196, 7
        %v1209 = vrot.slane %v1197, 7
        %v1210 = vsel %vm494, %v1208, %v1209
        %v1213 = vsel %vm494, 0.0, %v1208
        %v1214 = vld [vmem:[#allocation8] sm:$0xff]
        %v1215 = vld [vmem:[#allocation8 + $0x8] sm:$0xff]
        %v1216 = vld [vmem:[#allocation8 + $0x10] sm:$0xff]
        %v1217 = vld [vmem:[#allocation8 + $0x18] sm:$0xff]
        %v1218 = vld [vmem:[#allocation8 + $0x20] sm:$0xff]
        %v1219 = vld [vmem:[#allocation8 + $0x28] sm:$0xff]
        %v1220 = vld [vmem:[#allocation8 + $0x30] sm:$0xff]
        %v1221 = vld [vmem:[#allocation8 + $0x38] sm:$0xff]
        %v1222 = vld [vmem:[#allocation8 + $0x40] sm:$0xff]
        %v1223 = vld [vmem:[#allocation8 + $0x48] sm:$0xff]
        %v1224 = vld [vmem:[#allocation8 + $0x50] sm:$0xff]
        %v1225 = vld [vmem:[#allocation8 + $0x58] sm:$0xff]
        %v1226 = vld [vmem:[#allocation8 + $0x60] sm:$0xff]
        %v1227 = vld [vmem:[#allocation8 + $0x68] sm:$0xff]
        %v1228 = vld [vmem:[#allocation8 + $0x70] sm:$0xff]
        %v1229 = vld [vmem:[#allocation8 + $0x78] sm:$0xff]
        %s1230 = scalar_lea.vmem [#allocation8], 128
        %v1231 = vld [vmem:[%s1230] sm:$0xff]
        %v1232 = vld [vmem:[%s1230 + $0x8] sm:$0xff]
        %v1233 = vld [vmem:[%s1230 + $0x10] sm:$0xff]
        %v1234 = vld [vmem:[%s1230 + $0x18] sm:$0xff]
        %v1235 = vld [vmem:[%s1230 + $0x20] sm:$0xff]
        %v1236 = vld [vmem:[%s1230 + $0x28] sm:$0xff]
        %v1237 = vld [vmem:[%s1230 + $0x30] sm:$0xff]
        %v1238 = vld [vmem:[%s1230 + $0x38] sm:$0xff]
        %v1239 = vld [vmem:[%s1230 + $0x40] sm:$0xff]
        %v1240 = vld [vmem:[%s1230 + $0x48] sm:$0xff]
        %v1241 = vld [vmem:[%s1230 + $0x50] sm:$0xff]
        %v1242 = vld [vmem:[%s1230 + $0x58] sm:$0xff]
        %v1243 = vld [vmem:[%s1230 + $0x60] sm:$0xff]
        %v1244 = vld [vmem:[%s1230 + $0x68] sm:$0xff]
        %v1245 = vld [vmem:[%s1230 + $0x70] sm:$0xff]
        %v1246 = vld [vmem:[%s1230 + $0x78] sm:$0xff]
        %1247 = vmatprep.subr.mxu0 0.0
        %1248 = vmatpush1.msra.mxu0 %v1246
        %1249 = vmatprep.subr.mxu0 0.0
        %1250 = vmatpush1.msra.mxu0 %v1245
        %1251 = vmatprep.subr.mxu0 0.0
        %1252 = vmatpush1.msra.mxu0 %v1244
        %1253 = vmatprep.subr.mxu0 0.0
        %1254 = vmatpush1.msra.mxu0 %v1243
        %1255 = vmatprep.subr.mxu0 0.0
        %1256 = vmatpush1.msra.mxu0 %v1242
        %1257 = vmatprep.subr.mxu0 0.0
        %1258 = vmatpush1.msra.mxu0 %v1241
        %1259 = vmatprep.subr.mxu0 0.0
        %1260 = vmatpush1.msra.mxu0 %v1240
        %1261 = vmatprep.subr.mxu0 0.0
        %1262 = vmatpush1.msra.mxu0 %v1239
        %1263 = vmatprep.subr.mxu0 0.0
        %1264 = vmatpush1.msra.mxu0 %v1238
        %1265 = vmatprep.subr.mxu0 0.0
        %1266 = vmatpush1.msra.mxu0 %v1237
        %1267 = vmatprep.subr.mxu0 0.0
        %1268 = vmatpush1.msra.mxu0 %v1236
        %1269 = vmatprep.subr.mxu0 0.0
        %1270 = vmatpush1.msra.mxu0 %v1235
        %1271 = vmatprep.subr.mxu0 0.0
        %1272 = vmatpush1.msra.mxu0 %v1234
        %1273 = vmatprep.subr.mxu0 0.0
        %1274 = vmatpush1.msra.mxu0 %v1233
        %1275 = vmatprep.subr.mxu0 0.0
        %1276 = vmatpush1.msra.mxu0 %v1232
        %1277 = vmatprep.subr.mxu0 0.0
        %1278 = vmatpush1.msra.mxu0 %v1231
        %1279 = vmatprep.subr.mxu0 0.0
        %1280 = vmatpush2.msra.mxu0 0.0
        %1281 = vmatprep.subr.mxu0 0.0
        %1282 = vmatpush2.msra.mxu0 0.0
        %1283 = vmatprep.subr.mxu0 0.0
        %1284 = vmatpush2.msra.mxu0 0.0
        %1285 = vmatprep.subr.mxu0 0.0
        %1286 = vmatpush2.msra.mxu0 0.0
        %1287 = vmatprep.subr.mxu0 0.0
        %1288 = vmatpush2.msra.mxu0 0.0
        %1289 = vmatprep.subr.mxu0 0.0
        %1290 = vmatpush2.msra.mxu0 0.0
        %1291 = vmatprep.subr.mxu0 0.0
        %1292 = vmatpush2.msra.mxu0 0.0
        %1293 = vmatprep.subr.mxu0 0.0
        %1294 = vmatpush2.msra.mxu0 0.0
        %1295 = vmatprep.subr.mxu0 0.0
        %1296 = vmatpush2.msra.mxu0 0.0
        %1297 = vmatprep.subr.mxu0 0.0
        %1298 = vmatpush2.msra.mxu0 0.0
        %1299 = vmatprep.subr.mxu0 0.0
        %1300 = vmatpush2.msra.mxu0 0.0
        %1301 = vmatprep.subr.mxu0 0.0
        %1302 = vmatpush2.msra.mxu0 0.0
        %1303 = vmatprep.subr.mxu0 0.0
        %1304 = vmatpush2.msra.mxu0 0.0
        %1305 = vmatprep.subr.mxu0 0.0
        %1306 = vmatpush2.msra.mxu0 0.0
        %1307 = vmatprep.subr.mxu0 0.0
        %1308 = vmatpush2.msra.mxu0 0.0
        %1309 = vmatprep.subr.mxu0 0.0
        %1310 = vmatpush2.msra.mxu0 0.0
        %1311 = vmatprep.mubr.f32.mxu0 0.0
        %1312 = vmatmul.mubr.f32.gmra.mxu0 %v1194
        %v1313 = vpop.f32.mrf.mxu0
        %v1314 = vadd.f32 0.0, %v1313
        %v1315 = vpop.f32.mrf.mxu0
        %1316 = vmatprep.mubr.f32.mxu0 0.0
        %1317 = vmatmul.mubr.f32.gmra.mxu0 %v1195
        %v1318 = vpop.f32.mrf.mxu0
        %v1319 = vadd.f32 0.0, %v1318
        %v1320 = vpop.f32.mrf.mxu0
        %1321 = vmatprep.mubr.f32.mxu0 0.0
        %1322 = vmatmul.mubr.f32.gmra.mxu0 %v1196
        %v1323 = vpop.f32.mrf.mxu0
        %v1324 = vadd.f32 0.0, %v1323
        %v1325 = vpop.f32.mrf.mxu0
        %1326 = vmatprep.mubr.f32.mxu0 0.0
        %1327 = vmatmul.mubr.f32.gmra.mxu0 %v1197
        %v1328 = vpop.f32.mrf.mxu0
        %v1329 = vadd.f32 0.0, %v1328
        %v1330 = vpop.f32.mrf.mxu0
        %1331 = vdwg.mxu0
        %1332 = vmatprep.subr.mxu0 0.0
        %1333 = vmatpush1.msra.mxu0 %v1229
        %1334 = vmatprep.subr.mxu0 0.0
        %1335 = vmatpush1.msra.mxu0 %v1228
        %1336 = vmatprep.subr.mxu0 0.0
        %1337 = vmatpush1.msra.mxu0 %v1227
        %1338 = vmatprep.subr.mxu0 0.0
        %1339 = vmatpush1.msra.mxu0 %v1226
        %1340 = vmatprep.subr.mxu0 0.0
        %1341 = vmatpush1.msra.mxu0 %v1225
        %1342 = vmatprep.subr.mxu0 0.0
        %1343 = vmatpush1.msra.mxu0 %v1224
        %1344 = vmatprep.subr.mxu0 0.0
        %1345 = vmatpush1.msra.mxu0 %v1223
        %1346 = vmatprep.subr.mxu0 0.0
        %1347 = vmatpush1.msra.mxu0 %v1222
        %1348 = vmatprep.subr.mxu0 0.0
        %1349 = vmatpush1.msra.mxu0 %v1221
        %1350 = vmatprep.subr.mxu0 0.0
        %1351 = vmatpush1.msra.mxu0 %v1220
        %1352 = vmatprep.subr.mxu0 0.0
        %1353 = vmatpush1.msra.mxu0 %v1219
        %1354 = vmatprep.subr.mxu0 0.0
        %1355 = vmatpush1.msra.mxu0 %v1218
        %1356 = vmatprep.subr.mxu0 0.0
        %1357 = vmatpush1.msra.mxu0 %v1217
        %1358 = vmatprep.subr.mxu0 0.0
        %1359 = vmatpush1.msra.mxu0 %v1216
        %1360 = vmatprep.subr.mxu0 0.0
        %1361 = vmatpush1.msra.mxu0 %v1215
        %1362 = vmatprep.subr.mxu0 0.0
        %1363 = vmatpush1.msra.mxu0 %v1214
        %1364 = vmatprep.subr.mxu0 0.0
        %1365 = vmatpush2.msra.mxu0 0.0
        %1366 = vmatprep.subr.mxu0 0.0
        %1367 = vmatpush2.msra.mxu0 0.0
        %1368 = vmatprep.subr.mxu0 0.0
        %1369 = vmatpush2.msra.mxu0 0.0
        %1370 = vmatprep.subr.mxu0 0.0
        %1371 = vmatpush2.msra.mxu0 0.0
        %1372 = vmatprep.subr.mxu0 0.0
        %1373 = vmatpush2.msra.mxu0 0.0
        %1374 = vmatprep.subr.mxu0 0.0
        %1375 = vmatpush2.msra.mxu0 0.0
        %1376 = vmatprep.subr.mxu0 0.0
        %1377 = vmatpush2.msra.mxu0 0.0
        %1378 = vmatprep.subr.mxu0 0.0
        %1379 = vmatpush2.msra.mxu0 0.0
        %1380 = vmatprep.subr.mxu0 0.0
        %1381 = vmatpush2.msra.mxu0 0.0
        %1382 = vmatprep.subr.mxu0 0.0
        %1383 = vmatpush2.msra.mxu0 0.0
        %1384 = vmatprep.subr.mxu0 0.0
        %1385 = vmatpush2.msra.mxu0 0.0
        %1386 = vmatprep.subr.mxu0 0.0
        %1387 = vmatpush2.msra.mxu0 0.0
        %1388 = vmatprep.subr.mxu0 0.0
        %1389 = vmatpush2.msra.mxu0 0.0
        %1390 = vmatprep.subr.mxu0 0.0
        %1391 = vmatpush2.msra.mxu0 0.0
        %1392 = vmatprep.subr.mxu0 0.0
        %1393 = vmatpush2.msra.mxu0 0.0
        %1394 = vmatprep.subr.mxu0 0.0
        %1395 = vmatpush2.msra.mxu0 0.0
        %1396 = vmatprep.mubr.f32.mxu0 0.0
        %1397 = vmatmul.mubr.f32.gmra.mxu0 %v1205
        %v1398 = vpop.f32.mrf.mxu0
        %v1399 = vadd.f32 %v1314, %v1398
        %v1400 = vpop.f32.mrf.mxu0
        %1401 = vmatprep.mubr.f32.mxu0 0.0
        %1402 = vmatmul.mubr.f32.gmra.mxu0 %v1202
        %v1403 = vpop.f32.mrf.mxu0
        %v1404 = vadd.f32 %v1319, %v1403
        %v1405 = vpop.f32.mrf.mxu0
        %1406 = vmatprep.mubr.f32.mxu0 0.0
        %1407 = vmatmul.mubr.f32.gmra.mxu0 %v1213
        %v1408 = vpop.f32.mrf.mxu0
        %v1409 = vadd.f32 %v1324, %v1408
        %v1410 = vpop.f32.mrf.mxu0
        %1411 = vmatprep.mubr.f32.mxu0 0.0
        %1412 = vmatmul.mubr.f32.gmra.mxu0 %v1210
        %v1413 = vpop.f32.mrf.mxu0
        %v1414 = vadd.f32 %v1329, %v1413
        %v1415 = vpop.f32.mrf.mxu0
        %1416 = vdwg.mxu0
        %v1417 = vrot.slane %v1194, 1
        %v1418 = vrot.slane %v1195, 1
        %v1419 = vsel %vm712, %v1417, %v1418
        %v1422 = vsel %vm712, %v1418, 0.0
        %v1423 = vrot.slane %v1196, 1
        %v1424 = vrot.slane %v1197, 1
        %v1425 = vsel %vm712, %v1423, %v1424
        %v1428 = vsel %vm712, %v1424, 0.0
        %s1429 = scalar_lea.vmem [#allocation8], 256
        %v1430 = vld [vmem:[%s1429] sm:$0xff]
        %v1431 = vld [vmem:[%s1429 + $0x8] sm:$0xff]
        %v1432 = vld [vmem:[%s1429 + $0x10] sm:$0xff]
        %v1433 = vld [vmem:[%s1429 + $0x18] sm:$0xff]
        %v1434 = vld [vmem:[%s1429 + $0x20] sm:$0xff]
        %v1435 = vld [vmem:[%s1429 + $0x28] sm:$0xff]
        %v1436 = vld [vmem:[%s1429 + $0x30] sm:$0xff]
        %v1437 = vld [vmem:[%s1429 + $0x38] sm:$0xff]
        %v1438 = vld [vmem:[%s1429 + $0x40] sm:$0xff]
        %v1439 = vld [vmem:[%s1429 + $0x48] sm:$0xff]
        %v1440 = vld [vmem:[%s1429 + $0x50] sm:$0xff]
        %v1441 = vld [vmem:[%s1429 + $0x58] sm:$0xff]
        %v1442 = vld [vmem:[%s1429 + $0x60] sm:$0xff]
        %v1443 = vld [vmem:[%s1429 + $0x68] sm:$0xff]
        %v1444 = vld [vmem:[%s1429 + $0x70] sm:$0xff]
        %v1445 = vld [vmem:[%s1429 + $0x78] sm:$0xff]
        %1446 = vmatprep.subr.mxu0 0.0
        %1447 = vmatpush1.msra.mxu0 %v1445
        %1448 = vmatprep.subr.mxu0 0.0
        %1449 = vmatpush1.msra.mxu0 %v1444
        %1450 = vmatprep.subr.mxu0 0.0
        %1451 = vmatpush1.msra.mxu0 %v1443
        %1452 = vmatprep.subr.mxu0 0.0
        %1453 = vmatpush1.msra.mxu0 %v1442
        %1454 = vmatprep.subr.mxu0 0.0
        %1455 = vmatpush1.msra.mxu0 %v1441
        %1456 = vmatprep.subr.mxu0 0.0
        %1457 = vmatpush1.msra.mxu0 %v1440
        %1458 = vmatprep.subr.mxu0 0.0
        %1459 = vmatpush1.msra.mxu0 %v1439
        %1460 = vmatprep.subr.mxu0 0.0
        %1461 = vmatpush1.msra.mxu0 %v1438
        %1462 = vmatprep.subr.mxu0 0.0
        %1463 = vmatpush1.msra.mxu0 %v1437
        %1464 = vmatprep.subr.mxu0 0.0
        %1465 = vmatpush1.msra.mxu0 %v1436
        %1466 = vmatprep.subr.mxu0 0.0
        %1467 = vmatpush1.msra.mxu0 %v1435
        %1468 = vmatprep.subr.mxu0 0.0
        %1469 = vmatpush1.msra.mxu0 %v1434
        %1470 = vmatprep.subr.mxu0 0.0
        %1471 = vmatpush1.msra.mxu0 %v1433
        %1472 = vmatprep.subr.mxu0 0.0
        %1473 = vmatpush1.msra.mxu0 %v1432
        %1474 = vmatprep.subr.mxu0 0.0
        %1475 = vmatpush1.msra.mxu0 %v1431
        %1476 = vmatprep.subr.mxu0 0.0
        %1477 = vmatpush1.msra.mxu0 %v1430
        %1478 = vmatprep.subr.mxu0 0.0
        %1479 = vmatpush2.msra.mxu0 0.0
        %1480 = vmatprep.subr.mxu0 0.0
        %1481 = vmatpush2.msra.mxu0 0.0
        %1482 = vmatprep.subr.mxu0 0.0
        %1483 = vmatpush2.msra.mxu0 0.0
        %1484 = vmatprep.subr.mxu0 0.0
        %1485 = vmatpush2.msra.mxu0 0.0
        %1486 = vmatprep.subr.mxu0 0.0
        %1487 = vmatpush2.msra.mxu0 0.0
        %1488 = vmatprep.subr.mxu0 0.0
        %1489 = vmatpush2.msra.mxu0 0.0
        %1490 = vmatprep.subr.mxu0 0.0
        %1491 = vmatpush2.msra.mxu0 0.0
        %1492 = vmatprep.subr.mxu0 0.0
        %1493 = vmatpush2.msra.mxu0 0.0
        %1494 = vmatprep.subr.mxu0 0.0
        %1495 = vmatpush2.msra.mxu0 0.0
        %1496 = vmatprep.subr.mxu0 0.0
        %1497 = vmatpush2.msra.mxu0 0.0
        %1498 = vmatprep.subr.mxu0 0.0
        %1499 = vmatpush2.msra.mxu0 0.0
        %1500 = vmatprep.subr.mxu0 0.0
        %1501 = vmatpush2.msra.mxu0 0.0
        %1502 = vmatprep.subr.mxu0 0.0
        %1503 = vmatpush2.msra.mxu0 0.0
        %1504 = vmatprep.subr.mxu0 0.0
        %1505 = vmatpush2.msra.mxu0 0.0
        %1506 = vmatprep.subr.mxu0 0.0
        %1507 = vmatpush2.msra.mxu0 0.0
        %1508 = vmatprep.subr.mxu0 0.0
        %1509 = vmatpush2.msra.mxu0 0.0
        %1510 = vmatprep.mubr.f32.mxu0 0.0
        %1511 = vmatmul.mubr.f32.gmra.mxu0 %v1419
        %v1512 = vpop.f32.mrf.mxu0
        %v1513 = vadd.f32 0.0, %v1512
        %v1514 = vpop.f32.mrf.mxu0
        %1515 = vmatprep.mubr.f32.mxu0 0.0
        %1516 = vmatmul.mubr.f32.gmra.mxu0 %v1422
        %v1517 = vpop.f32.mrf.mxu0
        %v1518 = vadd.f32 0.0, %v1517
        %v1519 = vpop.f32.mrf.mxu0
        %1520 = vmatprep.mubr.f32.mxu0 0.0
        %1521 = vmatmul.mubr.f32.gmra.mxu0 %v1425
        %v1522 = vpop.f32.mrf.mxu0
        %v1523 = vadd.f32 0.0, %v1522
        %v1524 = vpop.f32.mrf.mxu0
        %1525 = vmatprep.mubr.f32.mxu0 0.0
        %1526 = vmatmul.mubr.f32.gmra.mxu0 %v1428
        %v1527 = vpop.f32.mrf.mxu0
        %v1528 = vadd.f32 0.0, %v1527
        %v1529 = vpop.f32.mrf.mxu0
        %1530 = vdwg.mxu0
        %v1531 = vadd.f32 %v1399, %v1513
        %v1532 = vadd.f32 %v1404, %v1518
        %v1533 = vadd.f32 %v1409, %v1523
        %v1534 = vadd.f32 %v1414, %v1528
        %v1535 = vld [vmem:[%s8] sm:$0x1]
        %v1537 = vlaneseq
        %v1538 = vshrl.u32 %v1537, 7
        %v1539 = vsub.s32 0, %v1538
        %v1540 = vrot.slane %v1535, %v1539
        %v1542 = vadd.f32 %v1531, %v1540
        %v1543 = vadd.f32 %v1532, %v1540
        %v1544 = vadd.f32 %v1533, %v1540
        %v1545 = vadd.f32 %v1534, %v1540
        %v1546 = vadd.f32 %v1542, %v842
        %v1547 = vadd.f32 %v1543, %v843
        %v1548 = vadd.f32 %v1544, %v844
        %v1549 = vadd.f32 %v1545, %v845
        %v1550 = vmax.f32 %v1546, 0.0
        %v1551 = vmax.f32 %v1547, 0.0
        %v1552 = vmax.f32 %v1548, 0.0
        %v1553 = vmax.f32 %v1549, 0.0
        %v1554 = vadd.f32 %v1550, %v1551
        %v1555 = vrot.slane %v1554, 4
        %v1556 = vadd.f32 %v1554, %v1555
        %v1557 = vrot.slane %v1556, 2
        %v1558 = vadd.f32 %v1556, %v1557
        %v1559 = vrot.slane %v1558, 1
        %v1560 = vadd.f32 %v1558, %v1559
        %v1561 = vadd.f32 %v1552, %v1553
        %v1562 = vrot.slane %v1561, 4
        %v1563 = vadd.f32 %v1561, %v1562
        %v1564 = vrot.slane %v1563, 2
        %v1565 = vadd.f32 %v1563, %v1564
        %v1566 = vrot.slane %v1565, 1
        %v1567 = vadd.f32 %v1565, %v1566
        %v1568 = vsel %vm494, %v1560, %v1567
        %v1569 = vmul.f32 %v1568, 0.00390625
        %v1570 = vld [vmem:[#allocation10] sm:$0xff]
        %v1571 = vld [vmem:[#allocation10 + $0x8] sm:$0xff]
        %v1572 = vld [vmem:[#allocation10 + $0x10] sm:$0xff]
        %v1573 = vld [vmem:[#allocation10 + $0x18] sm:$0xff]
        %v1574 = vld [vmem:[#allocation10 + $0x20] sm:$0xff]
        %v1575 = vld [vmem:[#allocation10 + $0x28] sm:$0xff]
        %v1576 = vld [vmem:[#allocation10 + $0x30] sm:$0xff]
        %v1577 = vld [vmem:[#allocation10 + $0x38] sm:$0xff]
        %v1578 = vld [vmem:[#allocation10 + $0x40] sm:$0xff]
        %v1579 = vld [vmem:[#allocation10 + $0x48] sm:$0xff]
        %v1580 = vld [vmem:[#allocation10 + $0x50] sm:$0xff]
        %v1581 = vld [vmem:[#allocation10 + $0x58] sm:$0xff]
        %v1582 = vld [vmem:[#allocation10 + $0x60] sm:$0xff]
        %v1583 = vld [vmem:[#allocation10 + $0x68] sm:$0xff]
        %v1584 = vld [vmem:[#allocation10 + $0x70] sm:$0xff]
        %v1585 = vld [vmem:[#allocation10 + $0x78] sm:$0xff]
        %v1586 = vld [vmem:[%s10] sm:$0x1]
        %v1588 = vlaneseq
        %v1589 = vshrl.u32 %v1588, 7
        %v1590 = vsub.s32 0, %v1589
        %v1591 = vrot.slane %v1586, %v1590
        %1593 = vmatprep.subr.mxu0 0.0
        %1594 = vmatpush1.msra.mxu0 %v1585
        %1595 = vmatprep.subr.mxu0 0.0
        %1596 = vmatpush1.msra.mxu0 %v1584
        %1597 = vmatprep.subr.mxu0 0.0
        %1598 = vmatpush1.msra.mxu0 %v1583
        %1599 = vmatprep.subr.mxu0 0.0
        %1600 = vmatpush1.msra.mxu0 %v1582
        %1601 = vmatprep.subr.mxu0 0.0
        %1602 = vmatpush1.msra.mxu0 %v1581
        %1603 = vmatprep.subr.mxu0 0.0
        %1604 = vmatpush1.msra.mxu0 %v1580
        %1605 = vmatprep.subr.mxu0 0.0
        %1606 = vmatpush1.msra.mxu0 %v1579
        %1607 = vmatprep.subr.mxu0 0.0
        %1608 = vmatpush1.msra.mxu0 %v1578
        %1609 = vmatprep.subr.mxu0 0.0
        %1610 = vmatpush1.msra.mxu0 %v1577
        %1611 = vmatprep.subr.mxu0 0.0
        %1612 = vmatpush1.msra.mxu0 %v1576
        %1613 = vmatprep.subr.mxu0 0.0
        %1614 = vmatpush1.msra.mxu0 %v1575
        %1615 = vmatprep.subr.mxu0 0.0
        %1616 = vmatpush1.msra.mxu0 %v1574
        %1617 = vmatprep.subr.mxu0 0.0
        %1618 = vmatpush1.msra.mxu0 %v1573
        %1619 = vmatprep.subr.mxu0 0.0
        %1620 = vmatpush1.msra.mxu0 %v1572
        %1621 = vmatprep.subr.mxu0 0.0
        %1622 = vmatpush1.msra.mxu0 %v1571
        %1623 = vmatprep.subr.mxu0 0.0
        %1624 = vmatpush1.msra.mxu0 %v1570
        %1625 = vmatprep.subr.mxu0 0.0
        %1626 = vmatpush2.msra.mxu0 0.0
        %1627 = vmatprep.subr.mxu0 0.0
        %1628 = vmatpush2.msra.mxu0 0.0
        %1629 = vmatprep.subr.mxu0 0.0
        %1630 = vmatpush2.msra.mxu0 0.0
        %1631 = vmatprep.subr.mxu0 0.0
        %1632 = vmatpush2.msra.mxu0 0.0
        %1633 = vmatprep.subr.mxu0 0.0
        %1634 = vmatpush2.msra.mxu0 0.0
        %1635 = vmatprep.subr.mxu0 0.0
        %1636 = vmatpush2.msra.mxu0 0.0
        %1637 = vmatprep.subr.mxu0 0.0
        %1638 = vmatpush2.msra.mxu0 0.0
        %1639 = vmatprep.subr.mxu0 0.0
        %1640 = vmatpush2.msra.mxu0 0.0
        %1641 = vmatprep.subr.mxu0 0.0
        %1642 = vmatpush2.msra.mxu0 0.0
        %1643 = vmatprep.subr.mxu0 0.0
        %1644 = vmatpush2.msra.mxu0 0.0
        %1645 = vmatprep.subr.mxu0 0.0
        %1646 = vmatpush2.msra.mxu0 0.0
        %1647 = vmatprep.subr.mxu0 0.0
        %1648 = vmatpush2.msra.mxu0 0.0
        %1649 = vmatprep.subr.mxu0 0.0
        %1650 = vmatpush2.msra.mxu0 0.0
        %1651 = vmatprep.subr.mxu0 0.0
        %1652 = vmatpush2.msra.mxu0 0.0
        %1653 = vmatprep.subr.mxu0 0.0
        %1654 = vmatpush2.msra.mxu0 0.0
        %1655 = vmatprep.subr.mxu0 0.0
        %1656 = vmatpush2.msra.mxu0 0.0
        %1657 = vmatprep.mubr.f32.mxu0 0.0
        %1658 = vmatmul.mubr.f32.gmra.mxu0 %v1569
        %v1659 = vpop.f32.mrf.mxu0
        %v1660 = vadd.f32 %v1591, %v1659
        %v1661 = vpop.f32.mrf.mxu0
        %1662 = vdwg.mxu0
        %v1665 = vunpack.c.l.s4 1966171168
        %v1666 = vunpack.c.0.s8 %v1665
        %v1667 = vlaneseq
        %v1668 = vshrl.u32 %v1667, 7
        %v1669 = vsub.s32 %v1666, %v1668
        %v1670 = vrot.slane %v1660, %v1669
        %v1671 = vcombine.high %v1670, %v1670
        %v1673 = vunpack.c.l.s4 1966171168
        %v1674 = vunpack.c.0.s8 %v1673
        %v1675 = vlaneseq
        %v1676 = vshrl.u32 %v1675, 7
        %v1677 = vsub.s32 %v1674, %v1676
        %v1678 = vrot.slane %v1670, %v1677
        %v1680 = vunpack.c.l.s4 1966171168
        %v1681 = vunpack.c.0.s8 %v1680
        %v1682 = vlaneseq
        %v1683 = vshrl.u32 %v1682, 7
        %v1684 = vsub.s32 %v1681, %v1683
        %v1685 = vrot.slane %v1671, %v1684
        %1688 = vst [vmem:[%s463] sm:$0x1] %v1678
        %1689 = vst [vmem:[%s463 + $0x1] sm:$0x1] %v1685
        %s1690 = sand.u32 %s274, 1
        %s1691 = scalar_lea.sflag [#allocation4], %s1690
        %s1692 = sand.u32 %s274, 1
        %s1693 = smul.addr %s1692, 2
        %s1694 = scalar_lea.vmem [#allocation11], %s1693
        // Predicated region
        $region85: #{tpu_custom_call.1} parent=63 // pred_check
          %p1695 = pneg %p284
        $region86: #{tpu_custom_call.1} parent=63 // pred_check_branch
          %1697 = sbr.rel (%p1695) target = $region88
        $region87: #{tpu_custom_call.1} parent=63 // pred_region
          %s1698 = smul.u32 2, %s30
          %s1700 = ssub.s32 32, 32
          %1701 = vsyncadd %s1691, %s1700
          %s1702 = smul.addr %s1698, 16
          %s1703 = scalar_lea.hbm %s11, %s1702
          %s1704 = sshll.u32 %s1694, 4
          %s1705 = int_to_ptr.vmem [resolvable:$true] %s1704
          %1710 = dma.vmem_to_hbm [thread:$0]  %s1705, 32, %s1703, %s1691, 16, 16, 1
        $region88: #{tpu_custom_call.1} parent=63 // pred_fallthru
          _
      $region64: #{tpu_custom_call.1} parent=5 // pred_fallthru
        _
      %p1711 = scmp.le.s32.totalorder 2, %s25
      // Predicated region
      $region89: #{tpu_custom_call.1} parent=5 // pred_check
        %p1712 = pneg %p1711
      $region90: #{tpu_custom_call.1} parent=5 // pred_check_branch
        %1714 = sbr.rel (%p1712) target = $region92
      $region91: #{tpu_custom_call.1} parent=5 // pred_region
        %s1715 = ssub.s32 %s25, 2
        // Predicated region
        $region93: #{tpu_custom_call.1} parent=91 // pred_check
          %p1716 = pneg %p290
        $region94: #{tpu_custom_call.1} parent=91 // pred_check_branch
          %1718 = sbr.rel (%p1716) target = $region96
        $region95: #{tpu_custom_call.1} parent=91 // pred_region
          %s1719 = sand.u32 %s275, 1
          %s1720 = scalar_lea.sflag [#allocation4], %s1719
          %s1721 = sand.u32 %s275, 1
          %s1722 = smul.addr %s1721, 2
          %s1723 = scalar_lea.vmem [#allocation11], %s1722
          %1724 = dma.done %s1720, 32
        $region96: #{tpu_custom_call.1} parent=91 // pred_fallthru
          _
      $region92: #{tpu_custom_call.1} parent=5 // pred_fallthru
        _
    $region6: #{tpu_custom_call.1} parent=1 // loop_footer
      %s29 = sadd.s32 1, %s25
    $region7: #{tpu_custom_call.1} parent=1 // loop_footer_branch
      %24 = sbr.rel target = $region3
    $region8: #{tpu_custom_call.1} parent=1 // loop_exit
      _
    %1725 = vsyncpa [#allocation3], 1
    %s1726 = scalar_lea.sflag [#allocation3], 1
    %1727 = vsyncpa %s1726, 1
    %1728 = vsyncpa [#allocation6], 1
    %1729 = vsyncpa [#allocation9], 1
    %1730 = vsyncpa [#allocation4], 1
    %s1731 = scalar_lea.sflag [#allocation4], 1
    %1732 = vsyncpa %s1731, 1

</llo_original>
